<compile_context>
chip_gen: v5e
topology: v5e:2x2
jax: 0.10.0
libtpu: 0.0.40
codegen_flags: <defaults>
</compile_context>

<pallas_src>
import functools
import math

import jax
import jax.numpy as jnp
from jax.experimental import pallas as pl
from jax.experimental.pallas import tpu as pltpu


# Matches PyTorch masked_fill(-1e18): fully-masked rows give a *uniform*
# softmax (not zeros/NaN).  Do not "fix" this to -inf.
NEG_INF_SCORE = -1e18


def _layernorm_rows(x, gamma, beta, eps=1e-6):
    """Row-wise LayerNorm over the last axis (matches nn.LayerNorm, eps=1e-6)."""
    mu = jnp.mean(x, axis=-1, keepdims=True)
    var = jnp.mean((x - mu) ** 2, axis=-1, keepdims=True)
    return (x - mu) * jax.lax.rsqrt(var + eps) * gamma + beta


def _pick_tile(n, pref):
    """Largest 'nice' tile: pref if it divides n, else the whole axis."""
    return pref if (n > pref and n % pref == 0) else n


# ----------------------------------------------------------------------------
# Fused multi-headed attention kernel
#   LN(q)[, LN(kv)] -> QKV proj -> online-softmax attention -> out proj
#   -> (+ residual), with heads as the leading batch dim of batched matmuls.
# ----------------------------------------------------------------------------
def _mha_body(q_ref, kv_ref, m_ref, g_ref, b_ref,
              wq_ref, bq_ref, wk_ref, bk_ref, wv_ref, bv_ref, wo_ref, bo_ref,
              o_ref, norm_ref, q_sc, m_sc, l_sc, acc_sc,
              *, heads, dh, causal, ln_kv, add_residual):
    ki = pl.program_id(2)
    nk = pl.num_programs(2)
    tq = q_ref.shape[1]
    tk = kv_ref.shape[1]
    d_model = q_ref.shape[2]
    scale = 1.0 / math.sqrt(dh)

    # ---- per-(batch, q-tile) init: LN + Q projection + accumulator reset ----
    @pl.when(ki == 0)
    def _():
        xq = q_ref[0]                                            # (tq, D) f32
        xqn = _layernorm_rows(xq, g_ref[...], b_ref[...])
        if norm_ref is not None:                                 # emit LN(q)
            norm_ref[0] = xqn
        xqn_h = jnp.broadcast_to(xqn.astype(jnp.bfloat16)[None],
                                 (heads, tq, d_model))
        qh = jnp.einsum('hqd,hdf->hqf', xqn_h, wq_ref[...],
                        preferred_element_type=jnp.float32) + bq_ref[...]
        q_sc[...] = qh * scale                                   # (H, tq, dh)
        m_sc[...] = jnp.full_like(m_sc, -jnp.inf)
        l_sc[...] = jnp.zeros_like(l_sc)
        acc_sc[...] = jnp.zeros_like(acc_sc)

    # ---- K / V projection for this key tile ---------------------------------
    xkv = kv_ref[0]                                              # (tk, D) f32
    if ln_kv:
        xkv = _layernorm_rows(xkv, g_ref[...], b_ref[...])
    xkv_h = jnp.broadcast_to(xkv.astype(jnp.bfloat16)[None],
                             (heads, tk, d_model))
    kh = (jnp.einsum('hkd,hdf->hkf', xkv_h, wk_ref[...],
                     preferred_element_type=jnp.float32)
          + bk_ref[...]).astype(jnp.bfloat16)
    vh = (jnp.einsum('hkd,hdf->hkf', xkv_h, wv_ref[...],
                     preferred_element_type=jnp.float32)
          + bv_ref[...]).astype(jnp.bfloat16)

    # ---- masked scores (mask built in-kernel from per-key pad + iota) -------
    s = jnp.einsum('hqd,hkd->hqk', q_sc[...].astype(jnp.bfloat16), kh,
                   preferred_element_type=jnp.float32)           # (H, tq, tk)
    masked = jnp.broadcast_to(m_ref[0] > 0, (tq, tk))            # per-key pad
    if causal:
        rows = pl.program_id(1) * tq + jax.lax.broadcasted_iota(
            jnp.int32, (tq, tk), 0)
        cols = ki * tk + jax.lax.broadcasted_iota(jnp.int32, (tq, tk), 1)
        masked = masked | (cols > rows)
    s = jnp.where(masked[None, :, :], NEG_INF_SCORE, s)

    # ---- online-softmax update ----------------------------------------------
    m_new = jnp.maximum(m_sc[...], jnp.max(s, axis=-1, keepdims=True))
    alpha = jnp.exp(m_sc[...] - m_new)
    p = jnp.exp(s - m_new)
    l_sc[...] = alpha * l_sc[...] + jnp.sum(p, axis=-1, keepdims=True)
    acc_sc[...] = alpha * acc_sc[...] + jnp.einsum(
        'hqk,hkd->hqd', p.astype(jnp.bfloat16), vh,
        preferred_element_type=jnp.float32)
    m_sc[...] = m_new

    # ---- finalize: normalize, output projection (head-major), residual ------
    @pl.when(ki == nk - 1)
    def _():
        ctx = acc_sc[...] * pl.reciprocal(l_sc[...], approx=True)  # (H,tq,dh)
        outh = jnp.einsum('hqd,hdf->hqf', ctx.astype(jnp.bfloat16), wo_ref[...],
                          preferred_element_type=jnp.float32)      # (H,tq,D)
        out = jnp.sum(outh, axis=0) + bo_ref[...]                  # (tq, D)
        if add_residual:
            out = out + q_ref[0]
        o_ref[0] = out


def _mha_kernel(*refs, heads, dh, causal, ln_kv, add_residual, emit_norm):
    if emit_norm:
        (q_ref, kv_ref, m_ref, g_ref, b_ref, wq, bq, wk, bk, wv, bv, wo, bo,
         o_ref, norm_ref, q_sc, m_sc, l_sc, acc_sc) = refs
    else:
        (q_ref, kv_ref, m_ref, g_ref, b_ref, wq, bq, wk, bk, wv, bv, wo, bo,
         o_ref, q_sc, m_sc, l_sc, acc_sc) = refs
        norm_ref = None
    _mha_body(q_ref, kv_ref, m_ref, g_ref, b_ref, wq, bq, wk, bk, wv, bv,
              wo, bo, o_ref, norm_ref, q_sc, m_sc, l_sc, acc_sc,
              heads=heads, dh=dh, causal=causal, ln_kv=ln_kv,
              add_residual=add_residual)


def multi_headed_attention(q_in, kv_in, key_pad_mask, ln_g, ln_b, p, heads, *,
                           causal=False, ln_kv=False, add_residual=False,
                           emit_norm=False):
    """Fused LN + MHA (+ residual).  key_pad_mask: int32 [B, 1, Lk], 1 = masked."""
    B, Lq, D = q_in.shape
    Lk = kv_in.shape[1]
    dh = D // heads
    tq = _pick_tile(Lq, 128)
    tk = _pick_tile(Lk, 512)
    nq, nk = Lq // tq, Lk // tk
    bf = jnp.bfloat16

    # Head-major weights (done once in plain JAX, tiny):
    #   wX_hm[h] = wX[:, h*dh:(h+1)*dh];  wo_hm[h] = wo[h*dh:(h+1)*dh, :]
    wq_hm = p["wq"].reshape(D, heads, dh).transpose(1, 0, 2).astype(bf)
    wk_hm = p["wk"].reshape(D, heads, dh).transpose(1, 0, 2).astype(bf)
    wv_hm = p["wv"].reshape(D, heads, dh).transpose(1, 0, 2).astype(bf)
    wo_hm = p["wo"].reshape(heads, dh, D).astype(bf)
    bq_hm = p["bq"].reshape(heads, 1, dh)
    bk_hm = p["bk"].reshape(heads, 1, dh)
    bv_hm = p["bv"].reshape(heads, 1, dh)
    bo = p["bo"].reshape(1, D)

    spec_q = pl.BlockSpec((1, tq, D), lambda b, qi, ki: (b, qi, 0))
    spec_kv = pl.BlockSpec((1, tk, D), lambda b, qi, ki: (b, ki, 0))
    spec_m = pl.BlockSpec((1, 1, tk), lambda b, qi, ki: (b, 0, ki))
    spec_ln = pl.BlockSpec((1, D), lambda b, qi, ki: (0, 0))
    spec_w = pl.BlockSpec((heads, D, dh), lambda b, qi, ki: (0, 0, 0))
    spec_bh = pl.BlockSpec((heads, 1, dh), lambda b, qi, ki: (0, 0, 0))
    spec_wo = pl.BlockSpec((heads, dh, D), lambda b, qi, ki: (0, 0, 0))
    spec_bo = pl.BlockSpec((1, D), lambda b, qi, ki: (0, 0))
    spec_out = pl.BlockSpec((1, tq, D), lambda b, qi, ki: (b, qi, 0))

    if emit_norm:
        out_shape = (jax.ShapeDtypeStruct((B, Lq, D), jnp.float32),
                     jax.ShapeDtypeStruct((B, Lq, D), jnp.float32))
        out_specs = (spec_out, spec_out)
    else:
        out_shape = jax.ShapeDtypeStruct((B, Lq, D), jnp.float32)
        out_specs = spec_out

    kern = functools.partial(_mha_kernel, heads=heads, dh=dh, causal=causal,
                             ln_kv=ln_kv, add_residual=add_residual,
                             emit_norm=emit_norm)

    cost = pl.CostEstimate(
        flops=int(2 * B * D * D * (2 * Lq + 2 * Lk * nq) + 4 * B * Lq * Lk * D),
        transcendentals=int(B * heads * Lq * Lk),
        bytes_accessed=int(4 * B * D * (3 * Lq + Lk) + 4 * B * Lk + 8 * D * D))

    return pl.pallas_call(
        kern,
        out_shape=out_shape,
        grid=(B, nq, nk),
        in_specs=[spec_q, spec_kv, spec_m, spec_ln, spec_ln,
                  spec_w, spec_bh, spec_w, spec_bh, spec_w, spec_bh,
                  spec_wo, spec_bo],
        out_specs=out_specs,
        scratch_shapes=[pltpu.VMEM((heads, tq, dh), jnp.float32),   # scaled Q
                        pltpu.VMEM((heads, tq, 1), jnp.float32),    # m
                        pltpu.VMEM((heads, tq, 1), jnp.float32),    # l
                        pltpu.VMEM((heads, tq, dh), jnp.float32)],  # acc
        compiler_params=pltpu.CompilerParams(
            dimension_semantics=("parallel", "parallel", "arbitrary"),
            vmem_limit_bytes=48 * 1024 * 1024),
        cost_estimate=cost,
    )(q_in, kv_in, key_pad_mask,
      ln_g.reshape(1, D), ln_b.reshape(1, D),
      wq_hm, bq_hm, wk_hm, bk_hm, wv_hm, bv_hm, wo_hm, bo)


# ----------------------------------------------------------------------------
# Fused PositionwiseFeedForward: x = gc + sc; w2(relu(w1(LN(x)))) + x
# ----------------------------------------------------------------------------
def _ffn_kernel(gc_ref, sc_ref, g_ref, b_ref, w1_ref, b1_ref, w2_ref, b2_ref,
                o_ref):
    x = gc_ref[0] + sc_ref[0]                       # fused residual add (f32)
    xn = _layernorm_rows(x, g_ref[...], b_ref[...])
    h = jnp.dot(xn.astype(jnp.bfloat16), w1_ref[...],
                preferred_element_type=jnp.float32) + b1_ref[...]
    h = jnp.maximum(h, 0.0)
    out = jnp.dot(h.astype(jnp.bfloat16), w2_ref[...],
                  preferred_element_type=jnp.float32) + b2_ref[...] + x
    o_ref[0] = out


def feed_forward(graph_context, src_context, p):
    B, T, D = graph_context.shape
    Dff = p["w1"].shape[1]
    tr = _pick_tile(T, 256)
    nr = T // tr
    bf = jnp.bfloat16
    cost = pl.CostEstimate(flops=int(4 * B * T * D * Dff),
                           transcendentals=0,
                           bytes_accessed=int(12 * B * T * D + 4 * D * Dff))
    return pl.pallas_call(
        _ffn_kernel,
        out_shape=jax.ShapeDtypeStruct((B, T, D), jnp.float32),
        grid=(B, nr),
        in_specs=[pl.BlockSpec((1, tr, D), lambda b, r: (b, r, 0)),
                  pl.BlockSpec((1, tr, D), lambda b, r: (b, r, 0)),
                  pl.BlockSpec((1, D), lambda b, r: (0, 0)),
                  pl.BlockSpec((1, D), lambda b, r: (0, 0)),
                  pl.BlockSpec((D, Dff), lambda b, r: (0, 0)),
                  pl.BlockSpec((1, Dff), lambda b, r: (0, 0)),
                  pl.BlockSpec((Dff, D), lambda b, r: (0, 0)),
                  pl.BlockSpec((1, D), lambda b, r: (0, 0))],
        out_specs=pl.BlockSpec((1, tr, D), lambda b, r: (b, r, 0)),
        compiler_params=pltpu.CompilerParams(
            dimension_semantics=("parallel", "parallel"),
            vmem_limit_bytes=48 * 1024 * 1024),
        cost_estimate=cost,
    )(graph_context, src_context,
      p["ln_g"].reshape(1, D), p["ln_b"].reshape(1, D),
      p["w1"].astype(bf), p["b1"].reshape(1, Dff),
      p["w2"].astype(bf), p["b2"].reshape(1, D))


# ----------------------------------------------------------------------------
# Full decoder layer forward
# ----------------------------------------------------------------------------
def transformer_decoder_layer(params, inputs, memory_bank, graph_bank,
                              src_pad_mask, tgt_pad_mask, graph_mask, heads):
    B, T, D = inputs.shape
    S = memory_bank.shape[1]
    G = graph_bank.shape[1]

    # Per-key pad masks (PreSumm convention: pad masks broadcast along queries);
    # the causal (subsequent) part of dec_mask is generated inside the kernel.
    tgt_key_pad = jnp.asarray(tgt_pad_mask).astype(jnp.int32).reshape(
        B, -1, T)[:, :1, :]
    src_key_pad = jnp.asarray(src_pad_mask).astype(jnp.int32).reshape(
        B, -1, S)[:, :1, :]
    graph_key_pad = jnp.asarray(graph_mask).astype(jnp.int32).reshape(B, 1, G)

    # 1) self-attention: LN1 fused (on q and k/v), causal mask in-kernel,
    #    fused "+ inputs" residual; also emits input_norm (= all_input).
    query, input_norm = multi_headed_attention(
        inputs, inputs, tgt_key_pad,
        params["ln1_g"], params["ln1_b"], params["self_attn"], heads,
        causal=True, ln_kv=True, add_residual=True, emit_norm=True)
    all_input = input_norm                       # previous_input is None

    # 2) src context attention: LN2 fused on query, fused "+ query" residual.
    src_context = multi_headed_attention(
        query, memory_bank, src_key_pad,
        params["ln2_g"], params["ln2_b"], params["ctx_src"], heads,
        causal=False, ln_kv=False, add_residual=True, emit_norm=False)

    # 3) graph context attention: LN3 fused on query, no residual (raw output).
    graph_context = multi_headed_attention(
        src_context, graph_bank, graph_key_pad,
        params["ln3_g"], params["ln3_b"], params["ctx_graph"], heads,
        causal=False, ln_kv=False, add_residual=False, emit_norm=False)

    # 4) FFN with fused (graph_context + src_context) residual.
    output = feed_forward(graph_context, src_context, params["ffn"])
    return output, all_input, src_context, graph_context


# ----------------------------------------------------------------------------
# Deterministic parameter init
# ----------------------------------------------------------------------------
def init_params(key, d_model, d_ff):
    def attn_params(k):
        ks = jax.random.split(k, 4)
        w = lambda kk: 0.05 * jax.random.normal(kk, (d_model, d_model), jnp.float32)
        z = jnp.zeros((d_model,), jnp.float32)
        return {"wk": w(ks[0]), "bk": z, "wv": w(ks[1]), "bv": z,
                "wq": w(ks[2]), "bq": z, "wo": w(ks[3]), "bo": z}

    ks = jax.random.split(key, 5)
    ones = jnp.ones((d_model,), jnp.float32)
    zeros = jnp.zeros((d_model,), jnp.float32)
    return {
        "self_attn": attn_params(ks[0]),
        "ctx_src": attn_params(ks[1]),
        "ctx_graph": attn_params(ks[2]),
        "ffn": {
            "ln_g": ones, "ln_b": zeros,
            "w1": 0.05 * jax.random.normal(ks[3], (d_model, d_ff), jnp.float32),
            "b1": jnp.zeros((d_ff,), jnp.float32),
            "w2": 0.05 * jax.random.normal(ks[4], (d_ff, d_model), jnp.float32),
            "b2": zeros,
        },
        "ln1_g": ones, "ln1_b": zeros,
        "ln2_g": ones, "ln2_b": zeros,
        "ln3_g": ones, "ln3_b": zeros,
    }


# TODO(synk): incremental decoding (layer_cache / previous_input / step),
# dropout training mode and the graph_bank=None branch are not implemented;
# this covers the default eval forward path.

if __name__ == "__main__":
    B, T, S, G = 2, 8, 16, 8
    d_model, heads, d_ff = 32, 4, 64

    root = jax.random.PRNGKey(0)
    k_par, k_in, k_mem, k_gr = jax.random.split(root, 4)
    params = init_params(k_par, d_model, d_ff)

    inputs = jax.random.normal(k_in, (B, T, d_model), jnp.float32)
    memory_bank = jax.random.normal(k_mem, (B, S, d_model), jnp.float32)
    graph_bank = jax.random.normal(k_gr, (B, G, d_model), jnp.float32)

    # pad masks: 1 = padded/masked (LongTensor semantics), broadcast over queries
    tgt_pad_mask = jnp.zeros((B, 1, T), jnp.int32)                  # no tgt padding
    src_pad_mask = jnp.broadcast_to(
        (jnp.arange(S) >= 12).astype(jnp.int32)[None, None, :], (B, 1, S))
    graph_mask = jnp.broadcast_to(
        (jnp.arange(G) >= 6).astype(jnp.int32)[None, :], (B, G))

    output, all_input, src_context, graph_context = transformer_decoder_layer(
        params, inputs, memory_bank, graph_bank,
        src_pad_mask, tgt_pad_mask, graph_mask, heads)

    jax.block_until_ready((output, all_input, src_context, graph_context))
    assert output.shape == (B, T, d_model)
    assert all_input.shape == (B, T, d_model)
    assert src_context.shape == (B, T, d_model)
    assert graph_context.shape == (B, T, d_model)
    print("KERNEL_OK")
</pallas_src>

<mosaic_0001>
module attributes {stable_mosaic.version = 11 : i64} {
  func.func @_mha_kernel(%arg0: i32, %arg1: i32, %arg2: i32, %arg3: memref<1x8x32xf32, #tpu.memory_space<vmem>>, %arg4: memref<1x8x32xf32, #tpu.memory_space<vmem>>, %arg5: memref<1x1x8xi32, #tpu.memory_space<vmem>>, %arg6: memref<1x32xf32, #tpu.memory_space<vmem>>, %arg7: memref<1x32xf32, #tpu.memory_space<vmem>>, %arg8: memref<4x32x8xbf16, #tpu.memory_space<vmem>>, %arg9: memref<4x1x8xf32, #tpu.memory_space<vmem>>, %arg10: memref<4x32x8xbf16, #tpu.memory_space<vmem>>, %arg11: memref<4x1x8xf32, #tpu.memory_space<vmem>>, %arg12: memref<4x32x8xbf16, #tpu.memory_space<vmem>>, %arg13: memref<4x1x8xf32, #tpu.memory_space<vmem>>, %arg14: memref<4x8x32xbf16, #tpu.memory_space<vmem>>, %arg15: memref<1x32xf32, #tpu.memory_space<vmem>>, %arg16: memref<1x8x32xf32, #tpu.memory_space<vmem>>, %arg17: memref<1x8x32xf32, #tpu.memory_space<vmem>>, %arg18: memref<4x8x8xf32, #tpu.memory_space<vmem>>, %arg19: memref<4x8x1xf32, #tpu.memory_space<vmem>>, %arg20: memref<4x8x1xf32, #tpu.memory_space<vmem>>, %arg21: memref<4x8x8xf32, #tpu.memory_space<vmem>>) attributes {dimension_semantics = [#tpu.dimension_semantics<parallel>, #tpu.dimension_semantics<parallel>, #tpu.dimension_semantics<arbitrary>], iteration_bounds = array<i64: 2, 1, 1>, scalar_prefetch = 0 : i64, scratch_operands = 4 : i64, tpu.core_type = #tpu.core_type<tc>, window_params = [{transform_indices = @transform_0, window_bounds = array<i64: 1, 8, 32>}, {transform_indices = @transform_1, window_bounds = array<i64: 1, 8, 32>}, {transform_indices = @transform_2, window_bounds = array<i64: 1, 1, 8>}, {pipeline_mode = #tpu.pipeline_mode<synchronous>, transform_indices = @transform_3, window_bounds = array<i64: 1, 32>}, {pipeline_mode = #tpu.pipeline_mode<synchronous>, transform_indices = @transform_4, window_bounds = array<i64: 1, 32>}, {pipeline_mode = #tpu.pipeline_mode<synchronous>, transform_indices = @transform_5, window_bounds = array<i64: 4, 32, 8>}, {pipeline_mode = #tpu.pipeline_mode<synchronous>, transform_indices = @transform_6, window_bounds = array<i64: 4, 1, 8>}, {pipeline_mode = #tpu.pipeline_mode<synchronous>, transform_indices = @transform_7, window_bounds = array<i64: 4, 32, 8>}, {pipeline_mode = #tpu.pipeline_mode<synchronous>, transform_indices = @transform_8, window_bounds = array<i64: 4, 1, 8>}, {pipeline_mode = #tpu.pipeline_mode<synchronous>, transform_indices = @transform_9, window_bounds = array<i64: 4, 32, 8>}, {pipeline_mode = #tpu.pipeline_mode<synchronous>, transform_indices = @transform_10, window_bounds = array<i64: 4, 1, 8>}, {pipeline_mode = #tpu.pipeline_mode<synchronous>, transform_indices = @transform_11, window_bounds = array<i64: 4, 8, 32>}, {pipeline_mode = #tpu.pipeline_mode<synchronous>, transform_indices = @transform_12, window_bounds = array<i64: 1, 32>}, {transform_indices = @transform_13, window_bounds = array<i64: 1, 8, 32>}, {transform_indices = @transform_14, window_bounds = array<i64: 1, 8, 32>}]} {
    %c0_i32 = arith.constant 0 : i32
    %0 = arith.cmpi eq, %arg2, %c0_i32 : i32
    %1 = arith.extui %0 : i1 to i32
    %c0_i32_0 = arith.constant 0 : i32
    %2 = arith.cmpi ne, %1, %c0_i32_0 : i32
    scf.if %2 {
      %c0_61 = arith.constant 0 : index
      %c0_62 = arith.constant 0 : index
      %c0_63 = arith.constant 0 : index
      %96 = vector.load %arg3[%c0_61, %c0_62, %c0_63] : memref<1x8x32xf32, #tpu.memory_space<vmem>>, vector<1x8x32xf32>
      %97 = vector.shape_cast %96 : vector<1x8x32xf32> to vector<8x32xf32>
      %c0_64 = arith.constant 0 : index
      %c0_65 = arith.constant 0 : index
      %98 = vector.load %arg6[%c0_64, %c0_65] : memref<1x32xf32, #tpu.memory_space<vmem>>, vector<1x32xf32>
      %c0_66 = arith.constant 0 : index
      %c0_67 = arith.constant 0 : index
      %99 = vector.load %arg7[%c0_66, %c0_67] : memref<1x32xf32, #tpu.memory_space<vmem>>, vector<1x32xf32>
      %cst_68 = arith.constant dense<0.000000e+00> : vector<8xf32>
      %100 = vector.multi_reduction <add>, %97, %cst_68 [1] : vector<8x32xf32> to vector<8xf32>
      %101 = vector.shape_cast %100 : vector<8xf32> to vector<8x1xf32>
      %cst_69 = arith.constant 3.200000e+01 : f32
      %102 = vector.broadcast %cst_69 : f32 to vector<8x1xf32>
      %103 = arith.divf %101, %102 : vector<8x1xf32>
      %104 = vector.broadcast %103 : vector<8x1xf32> to vector<8x32xf32>
      %105 = arith.subf %97, %104 : vector<8x32xf32>
      %106 = arith.mulf %105, %105 : vector<8x32xf32>
      %cst_70 = arith.constant dense<0.000000e+00> : vector<8xf32>
      %107 = vector.multi_reduction <add>, %106, %cst_70 [1] : vector<8x32xf32> to vector<8xf32>
      %108 = vector.shape_cast %107 : vector<8xf32> to vector<8x1xf32>
      %cst_71 = arith.constant 3.200000e+01 : f32
      %109 = vector.broadcast %cst_71 : f32 to vector<8x1xf32>
      %110 = arith.divf %108, %109 : vector<8x1xf32>
      %111 = vector.broadcast %103 : vector<8x1xf32> to vector<8x32xf32>
      %112 = arith.subf %97, %111 : vector<8x32xf32>
      %cst_72 = arith.constant 9.99999997E-7 : f32
      %113 = vector.broadcast %cst_72 : f32 to vector<8x1xf32>
      %114 = arith.addf %110, %113 : vector<8x1xf32>
      %115 = math.rsqrt %114 : vector<8x1xf32>
      %116 = vector.broadcast %115 : vector<8x1xf32> to vector<8x32xf32>
      %117 = arith.mulf %112, %116 : vector<8x32xf32>
      %118 = vector.broadcast %98 : vector<1x32xf32> to vector<8x32xf32>
      %119 = arith.mulf %117, %118 : vector<8x32xf32>
      %120 = vector.broadcast %99 : vector<1x32xf32> to vector<8x32xf32>
      %121 = arith.addf %119, %120 : vector<8x32xf32>
      %c0_73 = arith.constant 0 : index
      %c0_74 = arith.constant 0 : index
      %c0_75 = arith.constant 0 : index
      %122 = vector.load %arg17[%c0_73, %c0_74, %c0_75] : memref<1x8x32xf32, #tpu.memory_space<vmem>>, vector<1x8x32xf32>
      %123 = vector.shape_cast %122 : vector<1x8x32xf32> to vector<8x32xf32>
      %124 = vector.shape_cast %121 : vector<8x32xf32> to vector<1x8x32xf32>
      tpu.vector_store %arg17[%c0_73, %c0_74, %c0_75], %124 {strides = array<i32>} : memref<1x8x32xf32, #tpu.memory_space<vmem>>, vector<1x8x32xf32>,
      %125 = arith.truncf %121 : vector<8x32xf32> to vector<8x32xbf16>
      %126 = vector.shape_cast %125 : vector<8x32xbf16> to vector<1x8x32xbf16>
      %127 = vector.shape_cast %126 : vector<1x8x32xbf16> to vector<1x8x32xbf16>
      %128 = vector.broadcast %127 : vector<1x8x32xbf16> to vector<4x8x32xbf16>
      %c0_76 = arith.constant 0 : index
      %c0_77 = arith.constant 0 : index
      %c0_78 = arith.constant 0 : index
      %129 = vector.load %arg8[%c0_76, %c0_77, %c0_78] : memref<4x32x8xbf16, #tpu.memory_space<vmem>>, vector<4x32x8xbf16>
      "tpu.trace_start"() <{level = 10 : i32, message = "hqd,hdf->hqf"}> : () -> ()
      %cst_79 = arith.constant dense<0.000000e+00> : vector<4x8x8xf32>
      %130 = tpu.matmul %128, %129, %cst_79 {dimension_numbers = #tpu.dot_dimension_numbers<[2], [1], [1], [2], [0, 0, 0, 1, 1, 2], [0], [0]>} : vector<4x8x32xbf16>, vector<4x32x8xbf16>, vector<4x8x8xf32> -> vector<4x8x8xf32>
      "tpu.trace_stop"() : () -> ()
      %c0_80 = arith.constant 0 : index
      %c0_81 = arith.constant 0 : index
      %c0_82 = arith.constant 0 : index
      %131 = vector.load %arg9[%c0_80, %c0_81, %c0_82] : memref<4x1x8xf32, #tpu.memory_space<vmem>>, vector<4x1x8xf32>
      %132 = vector.broadcast %131 : vector<4x1x8xf32> to vector<4x8x8xf32>
      %133 = arith.addf %130, %132 : vector<4x8x8xf32>
      %cst_83 = arith.constant 0.353553385 : f32
      %134 = vector.broadcast %cst_83 : f32 to vector<4x8x8xf32>
      %135 = arith.mulf %133, %134 : vector<4x8x8xf32>
      %c0_84 = arith.constant 0 : index
      %c0_85 = arith.constant 0 : index
      %c0_86 = arith.constant 0 : index
      %136 = vector.load %arg18[%c0_84, %c0_85, %c0_86] : memref<4x8x8xf32, #tpu.memory_space<vmem>>, vector<4x8x8xf32>
      tpu.vector_store %arg18[%c0_84, %c0_85, %c0_86], %135 {strides = array<i32>} : memref<4x8x8xf32, #tpu.memory_space<vmem>>, vector<4x8x8xf32>,
      %cst_87 = arith.constant 0xFF800000 : f32
      %137 = vector.broadcast %cst_87 : f32 to vector<4x8x1xf32>
      %c0_88 = arith.constant 0 : index
      %c0_89 = arith.constant 0 : index
      %c0_90 = arith.constant 0 : index
      %138 = vector.load %arg19[%c0_88, %c0_89, %c0_90] : memref<4x8x1xf32, #tpu.memory_space<vmem>>, vector<4x8x1xf32>
      tpu.vector_store %arg19[%c0_88, %c0_89, %c0_90], %137 {strides = array<i32>} : memref<4x8x1xf32, #tpu.memory_space<vmem>>, vector<4x8x1xf32>,
      %cst_91 = arith.constant 0.000000e+00 : f32
      %139 = vector.broadcast %cst_91 : f32 to vector<4x8x1xf32>
      %c0_92 = arith.constant 0 : index
      %c0_93 = arith.constant 0 : index
      %c0_94 = arith.constant 0 : index
      %140 = vector.load %arg20[%c0_92, %c0_93, %c0_94] : memref<4x8x1xf32, #tpu.memory_space<vmem>>, vector<4x8x1xf32>
      tpu.vector_store %arg20[%c0_92, %c0_93, %c0_94], %139 {strides = array<i32>} : memref<4x8x1xf32, #tpu.memory_space<vmem>>, vector<4x8x1xf32>,
      %cst_95 = arith.constant 0.000000e+00 : f32
      %141 = vector.broadcast %cst_95 : f32 to vector<4x8x8xf32>
      %c0_96 = arith.constant 0 : index
      %c0_97 = arith.constant 0 : index
      %c0_98 = arith.constant 0 : index
      %142 = vector.load %arg21[%c0_96, %c0_97, %c0_98] : memref<4x8x8xf32, #tpu.memory_space<vmem>>, vector<4x8x8xf32>
      tpu.vector_store %arg21[%c0_96, %c0_97, %c0_98], %141 {strides = array<i32>} : memref<4x8x8xf32, #tpu.memory_space<vmem>>, vector<4x8x8xf32>,
    } else {
    }
    %c0 = arith.constant 0 : index
    %c0_1 = arith.constant 0 : index
    %c0_2 = arith.constant 0 : index
    %3 = vector.load %arg4[%c0, %c0_1, %c0_2] : memref<1x8x32xf32, #tpu.memory_space<vmem>>, vector<1x8x32xf32>
    %4 = vector.shape_cast %3 : vector<1x8x32xf32> to vector<8x32xf32>
    %c0_3 = arith.constant 0 : index
    %c0_4 = arith.constant 0 : index
    %5 = vector.load %arg6[%c0_3, %c0_4] : memref<1x32xf32, #tpu.memory_space<vmem>>, vector<1x32xf32>
    %c0_5 = arith.constant 0 : index
    %c0_6 = arith.constant 0 : index
    %6 = vector.load %arg7[%c0_5, %c0_6] : memref<1x32xf32, #tpu.memory_space<vmem>>, vector<1x32xf32>
    %cst = arith.constant dense<0.000000e+00> : vector<8xf32>
    %7 = vector.multi_reduction <add>, %4, %cst [1] : vector<8x32xf32> to vector<8xf32>
    %8 = vector.shape_cast %7 : vector<8xf32> to vector<8x1xf32>
    %cst_7 = arith.constant 3.200000e+01 : f32
    %9 = vector.broadcast %cst_7 : f32 to vector<8x1xf32>
    %10 = arith.divf %8, %9 : vector<8x1xf32>
    %11 = vector.broadcast %10 : vector<8x1xf32> to vector<8x32xf32>
    %12 = arith.subf %4, %11 : vector<8x32xf32>
    %13 = arith.mulf %12, %12 : vector<8x32xf32>
    %cst_8 = arith.constant dense<0.000000e+00> : vector<8xf32>
    %14 = vector.multi_reduction <add>, %13, %cst_8 [1] : vector<8x32xf32> to vector<8xf32>
    %15 = vector.shape_cast %14 : vector<8xf32> to vector<8x1xf32>
    %cst_9 = arith.constant 3.200000e+01 : f32
    %16 = vector.broadcast %cst_9 : f32 to vector<8x1xf32>
    %17 = arith.divf %15, %16 : vector<8x1xf32>
    %18 = vector.broadcast %10 : vector<8x1xf32> to vector<8x32xf32>
    %19 = arith.subf %4, %18 : vector<8x32xf32>
    %cst_10 = arith.constant 9.99999997E-7 : f32
    %20 = vector.broadcast %cst_10 : f32 to vector<8x1xf32>
    %21 = arith.addf %17, %20 : vector<8x1xf32>
    %22 = math.rsqrt %21 : vector<8x1xf32>
    %23 = vector.broadcast %22 : vector<8x1xf32> to vector<8x32xf32>
    %24 = arith.mulf %19, %23 : vector<8x32xf32>
    %25 = vector.broadcast %5 : vector<1x32xf32> to vector<8x32xf32>
    %26 = arith.mulf %24, %25 : vector<8x32xf32>
    %27 = vector.broadcast %6 : vector<1x32xf32> to vector<8x32xf32>
    %28 = arith.addf %26, %27 : vector<8x32xf32>
    %29 = arith.truncf %28 : vector<8x32xf32> to vector<8x32xbf16>
    %30 = vector.shape_cast %29 : vector<8x32xbf16> to vector<1x8x32xbf16>
    %31 = vector.shape_cast %30 : vector<1x8x32xbf16> to vector<1x8x32xbf16>
    %32 = vector.broadcast %31 : vector<1x8x32xbf16> to vector<4x8x32xbf16>
    %c0_11 = arith.constant 0 : index
    %c0_12 = arith.constant 0 : index
    %c0_13 = arith.constant 0 : index
    %33 = vector.load %arg10[%c0_11, %c0_12, %c0_13] : memref<4x32x8xbf16, #tpu.memory_space<vmem>>, vector<4x32x8xbf16>
    "tpu.trace_start"() <{level = 10 : i32, message = "hkd,hdf->hkf"}> : () -> ()
    %cst_14 = arith.constant dense<0.000000e+00> : vector<4x8x8xf32>
    %34 = tpu.matmul %32, %33, %cst_14 {dimension_numbers = #tpu.dot_dimension_numbers<[2], [1], [1], [2], [0, 0, 0, 1, 1, 2], [0], [0]>} : vector<4x8x32xbf16>, vector<4x32x8xbf16>, vector<4x8x8xf32> -> vector<4x8x8xf32>
    "tpu.trace_stop"() : () -> ()
    %c0_15 = arith.constant 0 : index
    %c0_16 = arith.constant 0 : index
    %c0_17 = arith.constant 0 : index
    %35 = vector.load %arg11[%c0_15, %c0_16, %c0_17] : memref<4x1x8xf32, #tpu.memory_space<vmem>>, vector<4x1x8xf32>
    %36 = vector.broadcast %35 : vector<4x1x8xf32> to vector<4x8x8xf32>
    %37 = arith.addf %34, %36 : vector<4x8x8xf32>
    %38 = arith.truncf %37 : vector<4x8x8xf32> to vector<4x8x8xbf16>
    %c0_18 = arith.constant 0 : index
    %c0_19 = arith.constant 0 : index
    %c0_20 = arith.constant 0 : index
    %39 = vector.load %arg12[%c0_18, %c0_19, %c0_20] : memref<4x32x8xbf16, #tpu.memory_space<vmem>>, vector<4x32x8xbf16>
    "tpu.trace_start"() <{level = 10 : i32, message = "hkd,hdf->hkf"}> : () -> ()
    %cst_21 = arith.constant dense<0.000000e+00> : vector<4x8x8xf32>
    %40 = tpu.matmul %32, %39, %cst_21 {dimension_numbers = #tpu.dot_dimension_numbers<[2], [1], [1], [2], [0, 0, 0, 1, 1, 2], [0], [0]>} : vector<4x8x32xbf16>, vector<4x32x8xbf16>, vector<4x8x8xf32> -> vector<4x8x8xf32>
    "tpu.trace_stop"() : () -> ()
    %c0_22 = arith.constant 0 : index
    %c0_23 = arith.constant 0 : index
    %c0_24 = arith.constant 0 : index
    %41 = vector.load %arg13[%c0_22, %c0_23, %c0_24] : memref<4x1x8xf32, #tpu.memory_space<vmem>>, vector<4x1x8xf32>
    %42 = vector.broadcast %41 : vector<4x1x8xf32> to vector<4x8x8xf32>
    %43 = arith.addf %40, %42 : vector<4x8x8xf32>
    %44 = arith.truncf %43 : vector<4x8x8xf32> to vector<4x8x8xbf16>
    %c0_25 = arith.constant 0 : index
    %c0_26 = arith.constant 0 : index
    %c0_27 = arith.constant 0 : index
    %45 = vector.load %arg18[%c0_25, %c0_26, %c0_27] : memref<4x8x8xf32, #tpu.memory_space<vmem>>, vector<4x8x8xf32>
    %46 = arith.truncf %45 : vector<4x8x8xf32> to vector<4x8x8xbf16>
    "tpu.trace_start"() <{level = 10 : i32, message = "hqd,hkd->hqk"}> : () -> ()
    %cst_28 = arith.constant dense<0.000000e+00> : vector<4x8x8xf32>
    %47 = tpu.matmul %46, %38, %cst_28 {dimension_numbers = #tpu.dot_dimension_numbers<[2], [2], [1], [1], [0, 0, 0, 1, 1, 1], [0], [0]>} : vector<4x8x8xbf16>, vector<4x8x8xbf16>, vector<4x8x8xf32> -> vector<4x8x8xf32>
    "tpu.trace_stop"() : () -> ()
    %c0_29 = arith.constant 0 : index
    %c0_30 = arith.constant 0 : index
    %c0_31 = arith.constant 0 : index
    %48 = vector.load %arg5[%c0_29, %c0_30, %c0_31] : memref<1x1x8xi32, #tpu.memory_space<vmem>>, vector<1x1x8xi32>
    %49 = vector.shape_cast %48 : vector<1x1x8xi32> to vector<1x8xi32>
    %c0_i32_32 = arith.constant 0 : i32
    %50 = vector.broadcast %c0_i32_32 : i32 to vector<1x8xi32>
    %51 = arith.cmpi sgt, %49, %50 : vector<1x8xi32>
    %52 = vector.shape_cast %51 : vector<1x8xi1> to vector<1x8xi1>
    %53 = vector.broadcast %52 : vector<1x8xi1> to vector<8x8xi1>
    %c8_i32 = arith.constant 8 : i32
    %54 = arith.muli %arg1, %c8_i32 : i32
    %55 = tpu.iota {dimensions = array<i32: 0>} : vector<8x8xi32>
    %56 = vector.broadcast %54 : i32 to vector<8x8xi32>
    %57 = arith.addi %56, %55 : vector<8x8xi32>
    %c8_i32_33 = arith.constant 8 : i32
    %58 = arith.muli %arg2, %c8_i32_33 : i32
    %59 = tpu.iota {dimensions = array<i32: 1>} : vector<8x8xi32>
    %60 = vector.broadcast %58 : i32 to vector<8x8xi32>
    %61 = arith.addi %60, %59 : vector<8x8xi32>
    %62 = arith.cmpi sgt, %61, %57 : vector<8x8xi32>
    %63 = arith.ori %53, %62 : vector<8x8xi1>
    %64 = vector.shape_cast %63 : vector<8x8xi1> to vector<1x8x8xi1>
    %cst_34 = arith.constant -9.99999984E+17 : f32
    %65 = vector.shape_cast %64 : vector<1x8x8xi1> to vector<1x8x8xi1>
    %66 = vector.broadcast %65 : vector<1x8x8xi1> to vector<4x8x8xi1>
    %67 = vector.broadcast %cst_34 : f32 to vector<4x8x8xf32>
    %68 = arith.select %66, %67, %47 : vector<4x8x8xi1>, vector<4x8x8xf32>
    %c0_35 = arith.constant 0 : index
    %c0_36 = arith.constant 0 : index
    %c0_37 = arith.constant 0 : index
    %69 = vector.load %arg19[%c0_35, %c0_36, %c0_37] : memref<4x8x1xf32, #tpu.memory_space<vmem>>, vector<4x8x1xf32>
    %cst_38 = arith.constant dense<0xFF800000> : vector<4x8xf32>
    %70 = vector.multi_reduction <maximumf>, %68, %cst_38 [2] : vector<4x8x8xf32> to vector<4x8xf32>
    %71 = vector.shape_cast %70 : vector<4x8xf32> to vector<4x8x1xf32>
    %72 = arith.maximumf %69, %71 : vector<4x8x1xf32>
    %c0_39 = arith.constant 0 : index
    %c0_40 = arith.constant 0 : index
    %c0_41 = arith.constant 0 : index
    %73 = vector.load %arg19[%c0_39, %c0_40, %c0_41] : memref<4x8x1xf32, #tpu.memory_space<vmem>>, vector<4x8x1xf32>
    %74 = arith.subf %73, %72 : vector<4x8x1xf32>
    %75 = math.exp %74 : vector<4x8x1xf32>
    %76 = vector.broadcast %72 : vector<4x8x1xf32> to vector<4x8x8xf32>
    %77 = arith.subf %68, %76 : vector<4x8x8xf32>
    %78 = math.exp %77 : vector<4x8x8xf32>
    %c0_42 = arith.constant 0 : index
    %c0_43 = arith.constant 0 : index
    %c0_44 = arith.constant 0 : index
    %79 = vector.load %arg20[%c0_42, %c0_43, %c0_44] : memref<4x8x1xf32, #tpu.memory_space<vmem>>, vector<4x8x1xf32>
    %80 = arith.mulf %75, %79 : vector<4x8x1xf32>
    %cst_45 = arith.constant dense<0.000000e+00> : vector<4x8xf32>
    %81 = vector.multi_reduction <add>, %78, %cst_45 [2] : vector<4x8x8xf32> to vector<4x8xf32>
    %82 = vector.shape_cast %81 : vector<4x8xf32> to vector<4x8x1xf32>
    %83 = arith.addf %80, %82 : vector<4x8x1xf32>
    %c0_46 = arith.constant 0 : index
    %c0_47 = arith.constant 0 : index
    %c0_48 = arith.constant 0 : index
    %84 = vector.load %arg20[%c0_46, %c0_47, %c0_48] : memref<4x8x1xf32, #tpu.memory_space<vmem>>, vector<4x8x1xf32>
    tpu.vector_store %arg20[%c0_46, %c0_47, %c0_48], %83 {strides = array<i32>} : memref<4x8x1xf32, #tpu.memory_space<vmem>>, vector<4x8x1xf32>,
    %c0_49 = arith.constant 0 : index
    %c0_50 = arith.constant 0 : index
    %c0_51 = arith.constant 0 : index
    %85 = vector.load %arg21[%c0_49, %c0_50, %c0_51] : memref<4x8x8xf32, #tpu.memory_space<vmem>>, vector<4x8x8xf32>
    %86 = vector.broadcast %75 : vector<4x8x1xf32> to vector<4x8x8xf32>
    %87 = arith.mulf %86, %85 : vector<4x8x8xf32>
    %88 = arith.truncf %78 : vector<4x8x8xf32> to vector<4x8x8xbf16>
    "tpu.trace_start"() <{level = 10 : i32, message = "hqk,hkd->hqd"}> : () -> ()
    %cst_52 = arith.constant dense<0.000000e+00> : vector<4x8x8xf32>
    %89 = tpu.matmul %88, %44, %cst_52 {dimension_numbers = #tpu.dot_dimension_numbers<[2], [1], [1], [2], [0, 0, 0, 1, 1, 2], [0], [0]>} : vector<4x8x8xbf16>, vector<4x8x8xbf16>, vector<4x8x8xf32> -> vector<4x8x8xf32>
    "tpu.trace_stop"() : () -> ()
    %90 = arith.addf %87, %89 : vector<4x8x8xf32>
    %c0_53 = arith.constant 0 : index
    %c0_54 = arith.constant 0 : index
    %c0_55 = arith.constant 0 : index
    %91 = vector.load %arg21[%c0_53, %c0_54, %c0_55] : memref<4x8x8xf32, #tpu.memory_space<vmem>>, vector<4x8x8xf32>
    tpu.vector_store %arg21[%c0_53, %c0_54, %c0_55], %90 {strides = array<i32>} : memref<4x8x8xf32, #tpu.memory_space<vmem>>, vector<4x8x8xf32>,
    %c0_56 = arith.constant 0 : index
    %c0_57 = arith.constant 0 : index
    %c0_58 = arith.constant 0 : index
    %92 = vector.load %arg19[%c0_56, %c0_57, %c0_58] : memref<4x8x1xf32, #tpu.memory_space<vmem>>, vector<4x8x1xf32>
    tpu.vector_store %arg19[%c0_56, %c0_57, %c0_58], %72 {strides = array<i32>} : memref<4x8x1xf32, #tpu.memory_space<vmem>>, vector<4x8x1xf32>,
    %c0_i32_59 = arith.constant 0 : i32
    %93 = arith.cmpi eq, %arg2, %c0_i32_59 : i32
    %94 = arith.extui %93 : i1 to i32
    %c0_i32_60 = arith.constant 0 : i32
    %95 = arith.cmpi ne, %94, %c0_i32_60 : i32
    scf.if %95 {
      %c0_61 = arith.constant 0 : index
      %c0_62 = arith.constant 0 : index
      %c0_63 = arith.constant 0 : index
      %96 = vector.load %arg21[%c0_61, %c0_62, %c0_63] : memref<4x8x8xf32, #tpu.memory_space<vmem>>, vector<4x8x8xf32>
      %c0_64 = arith.constant 0 : index
      %c0_65 = arith.constant 0 : index
      %c0_66 = arith.constant 0 : index
      %97 = vector.load %arg20[%c0_64, %c0_65, %c0_66] : memref<4x8x1xf32, #tpu.memory_space<vmem>>, vector<4x8x1xf32>
      %98 = tpu.reciprocal %97 {approx = true} : vector<4x8x1xf32> -> vector<4x8x1xf32>
      %99 = vector.broadcast %98 : vector<4x8x1xf32> to vector<4x8x8xf32>
      %100 = arith.mulf %96, %99 : vector<4x8x8xf32>
      %101 = arith.truncf %100 : vector<4x8x8xf32> to vector<4x8x8xbf16>
      %c0_67 = arith.constant 0 : index
      %c0_68 = arith.constant 0 : index
      %c0_69 = arith.constant 0 : index
      %102 = vector.load %arg14[%c0_67, %c0_68, %c0_69] : memref<4x8x32xbf16, #tpu.memory_space<vmem>>, vector<4x8x32xbf16>
      "tpu.trace_start"() <{level = 10 : i32, message = "hqd,hdf->hqf"}> : () -> ()
      %cst_70 = arith.constant dense<0.000000e+00> : vector<4x8x32xf32>
      %103 = tpu.matmul %101, %102, %cst_70 {dimension_numbers = #tpu.dot_dimension_numbers<[2], [1], [1], [2], [0, 0, 0, 1, 1, 2], [0], [0]>} : vector<4x8x8xbf16>, vector<4x8x32xbf16>, vector<4x8x32xf32> -> vector<4x8x32xf32>
      "tpu.trace_stop"() : () -> ()
      %cst_71 = arith.constant dense<0.000000e+00> : vector<8x32xf32>
      %104 = vector.multi_reduction <add>, %103, %cst_71 [0] : vector<4x8x32xf32> to vector<8x32xf32>
      %c0_72 = arith.constant 0 : index
      %c0_73 = arith.constant 0 : index
      %105 = vector.load %arg15[%c0_72, %c0_73] : memref<1x32xf32, #tpu.memory_space<vmem>>, vector<1x32xf32>
      %106 = vector.broadcast %105 : vector<1x32xf32> to vector<8x32xf32>
      %107 = arith.addf %104, %106 : vector<8x32xf32>
      %c0_74 = arith.constant 0 : index
      %c0_75 = arith.constant 0 : index
      %c0_76 = arith.constant 0 : index
      %108 = vector.load %arg3[%c0_74, %c0_75, %c0_76] : memref<1x8x32xf32, #tpu.memory_space<vmem>>, vector<1x8x32xf32>
      %109 = vector.shape_cast %108 : vector<1x8x32xf32> to vector<8x32xf32>
      %110 = arith.addf %107, %109 : vector<8x32xf32>
      %c0_77 = arith.constant 0 : index
      %c0_78 = arith.constant 0 : index
      %c0_79 = arith.constant 0 : index
      %111 = vector.load %arg16[%c0_77, %c0_78, %c0_79] : memref<1x8x32xf32, #tpu.memory_space<vmem>>, vector<1x8x32xf32>
      %112 = vector.shape_cast %111 : vector<1x8x32xf32> to vector<8x32xf32>
      %113 = vector.shape_cast %110 : vector<8x32xf32> to vector<1x8x32xf32>
      tpu.vector_store %arg16[%c0_77, %c0_78, %c0_79], %113 {strides = array<i32>} : memref<1x8x32xf32, #tpu.memory_space<vmem>>, vector<1x8x32xf32>,
    } else {
    }
    return
  }
  func.func @transform_0(%arg0: i32, %arg1: i32, %arg2: i32) -> (i32, i32, i32) {
    %c0_i32 = arith.constant 0 : i32
    %c0_i32_0 = arith.constant 0 : i32
    return %arg0, %arg1, %c0_i32 : i32, i32, i32
  }
  func.func @transform_1(%arg0: i32, %arg1: i32, %arg2: i32) -> (i32, i32, i32) {
    %c0_i32 = arith.constant 0 : i32
    %c0_i32_0 = arith.constant 0 : i32
    return %arg0, %arg2, %c0_i32 : i32, i32, i32
  }
  func.func @transform_2(%arg0: i32, %arg1: i32, %arg2: i32) -> (i32, i32, i32) {
    %c0_i32 = arith.constant 0 : i32
    %c0_i32_0 = arith.constant 0 : i32
    return %arg0, %c0_i32, %arg2 : i32, i32, i32
  }
  func.func @transform_3(%arg0: i32, %arg1: i32, %arg2: i32) -> (i32, i32) {
    %c0_i32 = arith.constant 0 : i32
    %c0_i32_0 = arith.constant 0 : i32
    %c0_i32_1 = arith.constant 0 : i32
    return %c0_i32, %c0_i32_0 : i32, i32
  }
  func.func @transform_4(%arg0: i32, %arg1: i32, %arg2: i32) -> (i32, i32) {
    %c0_i32 = arith.constant 0 : i32
    %c0_i32_0 = arith.constant 0 : i32
    %c0_i32_1 = arith.constant 0 : i32
    return %c0_i32, %c0_i32_0 : i32, i32
  }
  func.func @transform_5(%arg0: i32, %arg1: i32, %arg2: i32) -> (i32, i32, i32) {
    %c0_i32 = arith.constant 0 : i32
    %c0_i32_0 = arith.constant 0 : i32
    %c0_i32_1 = arith.constant 0 : i32
    %c0_i32_2 = arith.constant 0 : i32
    return %c0_i32, %c0_i32_0, %c0_i32_1 : i32, i32, i32
  }
  func.func @transform_6(%arg0: i32, %arg1: i32, %arg2: i32) -> (i32, i32, i32) {
    %c0_i32 = arith.constant 0 : i32
    %c0_i32_0 = arith.constant 0 : i32
    %c0_i32_1 = arith.constant 0 : i32
    %c0_i32_2 = arith.constant 0 : i32
    return %c0_i32, %c0_i32_0, %c0_i32_1 : i32, i32, i32
  }
  func.func @transform_7(%arg0: i32, %arg1: i32, %arg2: i32) -> (i32, i32, i32) {
    %c0_i32 = arith.constant 0 : i32
    %c0_i32_0 = arith.constant 0 : i32
    %c0_i32_1 = arith.constant 0 : i32
    %c0_i32_2 = arith.constant 0 : i32
    return %c0_i32, %c0_i32_0, %c0_i32_1 : i32, i32, i32
  }
  func.func @transform_8(%arg0: i32, %arg1: i32, %arg2: i32) -> (i32, i32, i32) {
    %c0_i32 = arith.constant 0 : i32
    %c0_i32_0 = arith.constant 0 : i32
    %c0_i32_1 = arith.constant 0 : i32
    %c0_i32_2 = arith.constant 0 : i32
    return %c0_i32, %c0_i32_0, %c0_i32_1 : i32, i32, i32
  }
  func.func @transform_9(%arg0: i32, %arg1: i32, %arg2: i32) -> (i32, i32, i32) {
    %c0_i32 = arith.constant 0 : i32
    %c0_i32_0 = arith.constant 0 : i32
    %c0_i32_1 = arith.constant 0 : i32
    %c0_i32_2 = arith.constant 0 : i32
    return %c0_i32, %c0_i32_0, %c0_i32_1 : i32, i32, i32
  }
  func.func @transform_10(%arg0: i32, %arg1: i32, %arg2: i32) -> (i32, i32, i32) {
    %c0_i32 = arith.constant 0 : i32
    %c0_i32_0 = arith.constant 0 : i32
    %c0_i32_1 = arith.constant 0 : i32
    %c0_i32_2 = arith.constant 0 : i32
    return %c0_i32, %c0_i32_0, %c0_i32_1 : i32, i32, i32
  }
  func.func @transform_11(%arg0: i32, %arg1: i32, %arg2: i32) -> (i32, i32, i32) {
    %c0_i32 = arith.constant 0 : i32
    %c0_i32_0 = arith.constant 0 : i32
    %c0_i32_1 = arith.constant 0 : i32
    %c0_i32_2 = arith.constant 0 : i32
    return %c0_i32, %c0_i32_0, %c0_i32_1 : i32, i32, i32
  }
  func.func @transform_12(%arg0: i32, %arg1: i32, %arg2: i32) -> (i32, i32) {
    %c0_i32 = arith.constant 0 : i32
    %c0_i32_0 = arith.constant 0 : i32
    %c0_i32_1 = arith.constant 0 : i32
    return %c0_i32, %c0_i32_0 : i32, i32
  }
  func.func @transform_13(%arg0: i32, %arg1: i32, %arg2: i32) -> (i32, i32, i32) {
    %c0_i32 = arith.constant 0 : i32
    %c0_i32_0 = arith.constant 0 : i32
    return %arg0, %arg1, %c0_i32 : i32, i32, i32
  }
  func.func @transform_14(%arg0: i32, %arg1: i32, %arg2: i32) -> (i32, i32, i32) {
    %c0_i32 = arith.constant 0 : i32
    %c0_i32_0 = arith.constant 0 : i32
    return %arg0, %arg1, %c0_i32 : i32, i32, i32
  }
}

</mosaic_0001>

<llo_original>
// kernel: tpu_custom_call.1
$region0: #{tpu_custom_call.1}
  #allocation0 [shape = 'u32[]', space=smem, size = 0x4, offset = 0x4, fixed_abs, tag = 'smem constant byte address 0x4 - core index']
  #allocation1 [shape = 'u32[72,128]{1,0:T(1,128)}', space=vmem, size = 0x9000, scoped, tag = 'internal scratch']
  #allocation2 [shape = 'f32[4,8,8]{2,1,0:T(8,128)}', space=vmem, size = 0x4000, scoped, tag = 'scratch operand']
  #allocation3 [shape = 'f32[4,8,1]{2,1,0:T(8,128)}', space=vmem, size = 0x4000, scoped, tag = 'scratch operand']
  #allocation4 [shape = 'f32[4,8,1]{2,1,0:T(8,128)}', space=vmem, size = 0x4000, scoped, tag = 'scratch operand']
  #allocation5 [shape = 'f32[4,8,8]{2,1,0:T(8,128)}', space=vmem, size = 0x4000, scoped, tag = 'scratch operand']
  %s0 = inlined_call_operand.vmem [shape: f32[2,8,32], index: 0, kind: input, shape index: {}]
  %s1 = inlined_call_operand.vmem [shape: f32[2,8,32], index: 1, kind: input, shape index: {}]
  %s2 = inlined_call_operand.vmem [shape: s32[2,1,8], index: 2, kind: input, shape index: {}]
  %s3 = inlined_call_operand.vmem [shape: f32[1,32], index: 3, kind: input, shape index: {}]
  %s4 = inlined_call_operand.vmem [shape: f32[1,32], index: 4, kind: input, shape index: {}]
  %s5 = inlined_call_operand.vmem [shape: bf16[4,32,8], index: 5, kind: input, shape index: {}]
  %s6 = inlined_call_operand.vmem [shape: f32[4,1,8], index: 6, kind: input, shape index: {}]
  %s7 = inlined_call_operand.vmem [shape: bf16[4,32,8], index: 7, kind: input, shape index: {}]
  %s8 = inlined_call_operand.vmem [shape: f32[4,1,8], index: 8, kind: input, shape index: {}]
  %s9 = inlined_call_operand.vmem [shape: bf16[4,32,8], index: 9, kind: input, shape index: {}]
  %s10 = inlined_call_operand.vmem [shape: f32[4,1,8], index: 10, kind: input, shape index: {}]
  %s11 = inlined_call_operand.vmem [shape: bf16[4,8,32], index: 11, kind: input, shape index: {}]
  %s12 = inlined_call_operand.vmem [shape: f32[1,32], index: 12, kind: input, shape index: {}]
  %s13 = inlined_call_operand.hbm [shape: f32[2,8,32], index: 13, kind: output, shape index: {0}]
  %s14 = inlined_call_operand.hbm [shape: f32[2,8,32], index: 14, kind: output, shape index: {1}]
  %15 = xla_tuple %s13, %s14
  %s16 = sld [smem:[#allocation0]]
  $region101: #{tpu_custom_call.1} parent=0
    _
  %s18 = ssub.s32 1, %s16
  %s19 = scalar_select 0, %s18, %s16
  $region1: #{tpu_custom_call.1} parent=0
    #allocation6 [shape = 'u8[8192]{0}', space=vmem, size = 0x2000, scoped, tag = 'output window, operand 0']
    #allocation7 [shape = 's32[2]{0}', space=sflag, size = 0x8, scoped, tag = 'scoped memory for tpu_custom_call.1']
    #allocation8 [shape = 'u8[8192]{0}', space=vmem, size = 0x2000, scoped, tag = 'output window, operand 1']
    #allocation9 [shape = 's32[2]{0}', space=sflag, size = 0x8, scoped, tag = 'scoped memory for tpu_custom_call.1']
    %20 = vsyncpa [#allocation7], 0
    %s21 = scalar_lea.sflag [#allocation7], 1
    %22 = vsyncpa %s21, 0
    %23 = vsyncpa [#allocation9], 0
    %s24 = scalar_lea.sflag [#allocation9], 1
    %25 = vsyncpa %s24, 0
    loop: start=0, step=1, limit=4
    $region2: #{tpu_custom_call.1} parent=1 // loop_pre_header
      _
    $region3: #{tpu_custom_call.1} parent=1 // loop_header
      %s27 = sphi 0, %s31
      %p28 = scmp.ge.s32.totalorder %s27, 4
      %s34 = sphi 0, %s53
      %s35 = sphi 0, %s49
      %s36 = sphi 0, %s45
      %s37 = sphi 0, %s34
      %s38 = sphi 0, %s35
      %s39 = sphi 0, %s36
      %s40 = sphi 0, %s37
      %s41 = sphi 0, %s38
      %s42 = sphi 0, %s39
      %s58 = sphi 0, %s60
      %s61 = sphi 0, %s58
      %s62 = sphi 0, %s61
      %s78 = sphi 0, %s62
      %s86 = sphi 0, %s88
      %s89 = sphi 0, %s86
      %s90 = sphi 0, %s89
      %s106 = sphi 0, %s90
      %s114 = sphi 0, %s116
      %s117 = sphi 0, %s114
      %s118 = sphi 0, %s117
      %s134 = sphi 0, %s118
      %s138 = sphi 0, %s138
      %s140 = sphi 0, %s138
      %s141 = sphi 0, %s140
      %s155 = sphi 0, %s141
      %s159 = sphi 0, %s159
      %s161 = sphi 0, %s159
      %s162 = sphi 0, %s161
      %s176 = sphi 0, %s162
      %s180 = sphi 0, %s180
      %s182 = sphi 0, %s180
      %s183 = sphi 0, %s182
      %s197 = sphi 0, %s183
      %s201 = sphi 0, %s201
      %s203 = sphi 0, %s201
      %s204 = sphi 0, %s203
      %s218 = sphi 0, %s204
      %s222 = sphi 0, %s222
      %s224 = sphi 0, %s222
      %s225 = sphi 0, %s224
      %s239 = sphi 0, %s225
      %s243 = sphi 0, %s243
      %s245 = sphi 0, %s243
      %s246 = sphi 0, %s245
      %s260 = sphi 0, %s246
      %s264 = sphi 0, %s264
      %s266 = sphi 0, %s264
      %s267 = sphi 0, %s266
      %s281 = sphi 0, %s267
      %s285 = sphi 0, %s285
      %s287 = sphi 0, %s285
      %s288 = sphi 0, %s287
      %s302 = sphi 0, %s288
      %s306 = sphi 0, %s306
      %s308 = sphi 0, %s306
      %s309 = sphi 0, %s308
      %s323 = sphi 0, %s309
      %s327 = sphi 0, %s327
      %s329 = sphi 0, %s327
      %s330 = sphi 0, %s329
      %s344 = sphi 0, %s330
      %s352 = sphi 0, %s354
      %s355 = sphi 0, %s352
      %s356 = sphi 0, %s355
      %s372 = sphi 0, %s356
      %s380 = sphi 0, %s382
      %s383 = sphi 0, %s380
      %s384 = sphi 0, %s383
      %s400 = sphi 0, %s384
    $region4: #{tpu_custom_call.1} parent=1 // loop_header_branch
      %30 = sbr.rel (%p28) target = $region8
    $region5: #{tpu_custom_call.1} parent=1 // loop_body
      %s32 = ssub.s32 %s27, 1
      %s33 = ssub.s32 %s27, 2
      %s43 = sadd.s32 1, %s36
      %p44 = scmp.ge.s32.totalorder %s43, 1
      %s45 = scalar_select %p44, 0, %s43
      %s46 = sadd.s32 1, %s35
      %s47 = scalar_select %p44, %s46, %s35
      %p48 = scmp.ge.s32.totalorder %s47, 1
      %s49 = scalar_select %p48, 0, %s47
      %s50 = sadd.s32 1, %s34
      %s51 = scalar_select %p48, %s50, %s34
      %p52 = scmp.ge.s32.totalorder %s51, 2
      %s53 = scalar_select %p52, 0, %s51
      %s54 = ssub.s32 %s34, %s53
      %s55 = ssub.s32 %s35, %s49
      %s56 = sor.u32 %s54, %s55
      %p57 = scmp.eq.s32.totalorder %s56, 0
      %s59 = sadd.s32 %s58, 1
      %s60 = scalar_select %p57, %s58, %s59
      %p63 = pneg %p57
      %p64 = scmp.eq.s32.totalorder %s27, 1
      %p65 = por %p63, %p64
      %p66 = scmp.ne.s32.totalorder %s58, %s61
      %p67 = scmp.eq.s32.totalorder %s27, 0
      %p68 = por %p66, %p67
      %p69 = scmp.ne.s32.totalorder %s58, %s61
      %p70 = scmp.eq.s32.totalorder %s32, 1
      %p71 = por %p69, %p70
      %p72 = scmp.ne.s32.totalorder %s61, %s62
      %p73 = scmp.eq.s32.totalorder %s32, 0
      %p74 = por %p72, %p73
      %p75 = scmp.ne.s32.totalorder %s61, %s62
      %p76 = scmp.eq.s32.totalorder %s33, 1
      %p77 = por %p75, %p76
      %p79 = scmp.ne.s32.totalorder %s62, %s78
      %p80 = scmp.eq.s32.totalorder %s33, 0
      %p81 = por %p79, %p80
      %s82 = ssub.s32 %s34, %s53
      %s83 = ssub.s32 %s36, %s45
      %s84 = sor.u32 %s82, %s83
      %p85 = scmp.eq.s32.totalorder %s84, 0
      %s87 = sadd.s32 %s86, 1
      %s88 = scalar_select %p85, %s86, %s87
      %p91 = pneg %p85
      %p92 = scmp.eq.s32.totalorder %s27, 1
      %p93 = por %p91, %p92
      %p94 = scmp.ne.s32.totalorder %s86, %s89
      %p95 = scmp.eq.s32.totalorder %s27, 0
      %p96 = por %p94, %p95
      %p97 = scmp.ne.s32.totalorder %s86, %s89
      %p98 = scmp.eq.s32.totalorder %s32, 1
      %p99 = por %p97, %p98
      %p100 = scmp.ne.s32.totalorder %s89, %s90
      %p101 = scmp.eq.s32.totalorder %s32, 0
      %p102 = por %p100, %p101
      %p103 = scmp.ne.s32.totalorder %s89, %s90
      %p104 = scmp.eq.s32.totalorder %s33, 1
      %p105 = por %p103, %p104
      %p107 = scmp.ne.s32.totalorder %s90, %s106
      %p108 = scmp.eq.s32.totalorder %s33, 0
      %p109 = por %p107, %p108
      %s110 = ssub.s32 %s34, %s53
      %s111 = ssub.s32 %s36, %s45
      %s112 = sor.u32 %s110, %s111
      %p113 = scmp.eq.s32.totalorder %s112, 0
      %s115 = sadd.s32 %s114, 1
      %s116 = scalar_select %p113, %s114, %s115
      %p119 = pneg %p113
      %p120 = scmp.eq.s32.totalorder %s27, 1
      %p121 = por %p119, %p120
      %p122 = scmp.ne.s32.totalorder %s114, %s117
      %p123 = scmp.eq.s32.totalorder %s27, 0
      %p124 = por %p122, %p123
      %p125 = scmp.ne.s32.totalorder %s114, %s117
      %p126 = scmp.eq.s32.totalorder %s32, 1
      %p127 = por %p125, %p126
      %p128 = scmp.ne.s32.totalorder %s117, %s118
      %p129 = scmp.eq.s32.totalorder %s32, 0
      %p130 = por %p128, %p129
      %p131 = scmp.ne.s32.totalorder %s117, %s118
      %p132 = scmp.eq.s32.totalorder %s33, 1
      %p133 = por %p131, %p132
      %p135 = scmp.ne.s32.totalorder %s118, %s134
      %p136 = scmp.eq.s32.totalorder %s33, 0
      %p137 = por %p135, %p136
      %s139 = sadd.s32 %s138, 1
      %p142 = scmp.eq.s32.totalorder %s27, 1
      %p143 = scmp.ne.s32.totalorder %s138, %s140
      %p144 = scmp.eq.s32.totalorder %s27, 0
      %p145 = por %p143, %p144
      %p146 = scmp.ne.s32.totalorder %s138, %s140
      %p147 = scmp.eq.s32.totalorder %s32, 1
      %p148 = por %p146, %p147
      %p149 = scmp.ne.s32.totalorder %s140, %s141
      %p150 = scmp.eq.s32.totalorder %s32, 0
      %p151 = por %p149, %p150
      %p152 = scmp.ne.s32.totalorder %s140, %s141
      %p153 = scmp.eq.s32.totalorder %s33, 1
      %p154 = por %p152, %p153
      %p156 = scmp.ne.s32.totalorder %s141, %s155
      %p157 = scmp.eq.s32.totalorder %s33, 0
      %p158 = por %p156, %p157
      %s160 = sadd.s32 %s159, 1
      %p163 = scmp.eq.s32.totalorder %s27, 1
      %p164 = scmp.ne.s32.totalorder %s159, %s161
      %p165 = scmp.eq.s32.totalorder %s27, 0
      %p166 = por %p164, %p165
      %p167 = scmp.ne.s32.totalorder %s159, %s161
      %p168 = scmp.eq.s32.totalorder %s32, 1
      %p169 = por %p167, %p168
      %p170 = scmp.ne.s32.totalorder %s161, %s162
      %p171 = scmp.eq.s32.totalorder %s32, 0
      %p172 = por %p170, %p171
      %p173 = scmp.ne.s32.totalorder %s161, %s162
      %p174 = scmp.eq.s32.totalorder %s33, 1
      %p175 = por %p173, %p174
      %p177 = scmp.ne.s32.totalorder %s162, %s176
      %p178 = scmp.eq.s32.totalorder %s33, 0
      %p179 = por %p177, %p178
      %s181 = sadd.s32 %s180, 1
      %p184 = scmp.eq.s32.totalorder %s27, 1
      %p185 = scmp.ne.s32.totalorder %s180, %s182
      %p186 = scmp.eq.s32.totalorder %s27, 0
      %p187 = por %p185, %p186
      %p188 = scmp.ne.s32.totalorder %s180, %s182
      %p189 = scmp.eq.s32.totalorder %s32, 1
      %p190 = por %p188, %p189
      %p191 = scmp.ne.s32.totalorder %s182, %s183
      %p192 = scmp.eq.s32.totalorder %s32, 0
      %p193 = por %p191, %p192
      %p194 = scmp.ne.s32.totalorder %s182, %s183
      %p195 = scmp.eq.s32.totalorder %s33, 1
      %p196 = por %p194, %p195
      %p198 = scmp.ne.s32.totalorder %s183, %s197
      %p199 = scmp.eq.s32.totalorder %s33, 0
      %p200 = por %p198, %p199
      %s202 = sadd.s32 %s201, 1
      %p205 = scmp.eq.s32.totalorder %s27, 1
      %p206 = scmp.ne.s32.totalorder %s201, %s203
      %p207 = scmp.eq.s32.totalorder %s27, 0
      %p208 = por %p206, %p207
      %p209 = scmp.ne.s32.totalorder %s201, %s203
      %p210 = scmp.eq.s32.totalorder %s32, 1
      %p211 = por %p209, %p210
      %p212 = scmp.ne.s32.totalorder %s203, %s204
      %p213 = scmp.eq.s32.totalorder %s32, 0
      %p214 = por %p212, %p213
      %p215 = scmp.ne.s32.totalorder %s203, %s204
      %p216 = scmp.eq.s32.totalorder %s33, 1
      %p217 = por %p215, %p216
      %p219 = scmp.ne.s32.totalorder %s204, %s218
      %p220 = scmp.eq.s32.totalorder %s33, 0
      %p221 = por %p219, %p220
      %s223 = sadd.s32 %s222, 1
      %p226 = scmp.eq.s32.totalorder %s27, 1
      %p227 = scmp.ne.s32.totalorder %s222, %s224
      %p228 = scmp.eq.s32.totalorder %s27, 0
      %p229 = por %p227, %p228
      %p230 = scmp.ne.s32.totalorder %s222, %s224
      %p231 = scmp.eq.s32.totalorder %s32, 1
      %p232 = por %p230, %p231
      %p233 = scmp.ne.s32.totalorder %s224, %s225
      %p234 = scmp.eq.s32.totalorder %s32, 0
      %p235 = por %p233, %p234
      %p236 = scmp.ne.s32.totalorder %s224, %s225
      %p237 = scmp.eq.s32.totalorder %s33, 1
      %p238 = por %p236, %p237
      %p240 = scmp.ne.s32.totalorder %s225, %s239
      %p241 = scmp.eq.s32.totalorder %s33, 0
      %p242 = por %p240, %p241
      %s244 = sadd.s32 %s243, 1
      %p247 = scmp.eq.s32.totalorder %s27, 1
      %p248 = scmp.ne.s32.totalorder %s243, %s245
      %p249 = scmp.eq.s32.totalorder %s27, 0
      %p250 = por %p248, %p249
      %p251 = scmp.ne.s32.totalorder %s243, %s245
      %p252 = scmp.eq.s32.totalorder %s32, 1
      %p253 = por %p251, %p252
      %p254 = scmp.ne.s32.totalorder %s245, %s246
      %p255 = scmp.eq.s32.totalorder %s32, 0
      %p256 = por %p254, %p255
      %p257 = scmp.ne.s32.totalorder %s245, %s246
      %p258 = scmp.eq.s32.totalorder %s33, 1
      %p259 = por %p257, %p258
      %p261 = scmp.ne.s32.totalorder %s246, %s260
      %p262 = scmp.eq.s32.totalorder %s33, 0
      %p263 = por %p261, %p262
      %s265 = sadd.s32 %s264, 1
      %p268 = scmp.eq.s32.totalorder %s27, 1
      %p269 = scmp.ne.s32.totalorder %s264, %s266
      %p270 = scmp.eq.s32.totalorder %s27, 0
      %p271 = por %p269, %p270
      %p272 = scmp.ne.s32.totalorder %s264, %s266
      %p273 = scmp.eq.s32.totalorder %s32, 1
      %p274 = por %p272, %p273
      %p275 = scmp.ne.s32.totalorder %s266, %s267
      %p276 = scmp.eq.s32.totalorder %s32, 0
      %p277 = por %p275, %p276
      %p278 = scmp.ne.s32.totalorder %s266, %s267
      %p279 = scmp.eq.s32.totalorder %s33, 1
      %p280 = por %p278, %p279
      %p282 = scmp.ne.s32.totalorder %s267, %s281
      %p283 = scmp.eq.s32.totalorder %s33, 0
      %p284 = por %p282, %p283
      %s286 = sadd.s32 %s285, 1
      %p289 = scmp.eq.s32.totalorder %s27, 1
      %p290 = scmp.ne.s32.totalorder %s285, %s287
      %p291 = scmp.eq.s32.totalorder %s27, 0
      %p292 = por %p290, %p291
      %p293 = scmp.ne.s32.totalorder %s285, %s287
      %p294 = scmp.eq.s32.totalorder %s32, 1
      %p295 = por %p293, %p294
      %p296 = scmp.ne.s32.totalorder %s287, %s288
      %p297 = scmp.eq.s32.totalorder %s32, 0
      %p298 = por %p296, %p297
      %p299 = scmp.ne.s32.totalorder %s287, %s288
      %p300 = scmp.eq.s32.totalorder %s33, 1
      %p301 = por %p299, %p300
      %p303 = scmp.ne.s32.totalorder %s288, %s302
      %p304 = scmp.eq.s32.totalorder %s33, 0
      %p305 = por %p303, %p304
      %s307 = sadd.s32 %s306, 1
      %p310 = scmp.eq.s32.totalorder %s27, 1
      %p311 = scmp.ne.s32.totalorder %s306, %s308
      %p312 = scmp.eq.s32.totalorder %s27, 0
      %p313 = por %p311, %p312
      %p314 = scmp.ne.s32.totalorder %s306, %s308
      %p315 = scmp.eq.s32.totalorder %s32, 1
      %p316 = por %p314, %p315
      %p317 = scmp.ne.s32.totalorder %s308, %s309
      %p318 = scmp.eq.s32.totalorder %s32, 0
      %p319 = por %p317, %p318
      %p320 = scmp.ne.s32.totalorder %s308, %s309
      %p321 = scmp.eq.s32.totalorder %s33, 1
      %p322 = por %p320, %p321
      %p324 = scmp.ne.s32.totalorder %s309, %s323
      %p325 = scmp.eq.s32.totalorder %s33, 0
      %p326 = por %p324, %p325
      %s328 = sadd.s32 %s327, 1
      %p331 = scmp.eq.s32.totalorder %s27, 1
      %p332 = scmp.ne.s32.totalorder %s327, %s329
      %p333 = scmp.eq.s32.totalorder %s27, 0
      %p334 = por %p332, %p333
      %p335 = scmp.ne.s32.totalorder %s327, %s329
      %p336 = scmp.eq.s32.totalorder %s32, 1
      %p337 = por %p335, %p336
      %p338 = scmp.ne.s32.totalorder %s329, %s330
      %p339 = scmp.eq.s32.totalorder %s32, 0
      %p340 = por %p338, %p339
      %p341 = scmp.ne.s32.totalorder %s329, %s330
      %p342 = scmp.eq.s32.totalorder %s33, 1
      %p343 = por %p341, %p342
      %p345 = scmp.ne.s32.totalorder %s330, %s344
      %p346 = scmp.eq.s32.totalorder %s33, 0
      %p347 = por %p345, %p346
      %s348 = ssub.s32 %s34, %s53
      %s349 = ssub.s32 %s35, %s49
      %s350 = sor.u32 %s348, %s349
      %p351 = scmp.eq.s32.totalorder %s350, 0
      %s353 = sadd.s32 %s352, 1
      %s354 = scalar_select %p351, %s352, %s353
      %p357 = pneg %p351
      %p358 = scmp.eq.s32.totalorder %s27, 1
      %p359 = por %p357, %p358
      %p360 = scmp.ne.s32.totalorder %s352, %s355
      %p361 = scmp.eq.s32.totalorder %s27, 0
      %p362 = por %p360, %p361
      %p363 = scmp.ne.s32.totalorder %s352, %s355
      %p364 = scmp.eq.s32.totalorder %s32, 1
      %p365 = por %p363, %p364
      %p366 = scmp.ne.s32.totalorder %s355, %s356
      %p367 = scmp.eq.s32.totalorder %s32, 0
      %p368 = por %p366, %p367
      %p369 = scmp.ne.s32.totalorder %s355, %s356
      %p370 = scmp.eq.s32.totalorder %s33, 1
      %p371 = por %p369, %p370
      %p373 = scmp.ne.s32.totalorder %s356, %s372
      %p374 = scmp.eq.s32.totalorder %s33, 0
      %p375 = por %p373, %p374
      %s376 = ssub.s32 %s34, %s53
      %s377 = ssub.s32 %s35, %s49
      %s378 = sor.u32 %s376, %s377
      %p379 = scmp.eq.s32.totalorder %s378, 0
      %s381 = sadd.s32 %s380, 1
      %s382 = scalar_select %p379, %s380, %s381
      %p385 = pneg %p379
      %p386 = scmp.eq.s32.totalorder %s27, 1
      %p387 = por %p385, %p386
      %p388 = scmp.ne.s32.totalorder %s380, %s383
      %p389 = scmp.eq.s32.totalorder %s27, 0
      %p390 = por %p388, %p389
      %p391 = scmp.ne.s32.totalorder %s380, %s383
      %p392 = scmp.eq.s32.totalorder %s32, 1
      %p393 = por %p391, %p392
      %p394 = scmp.ne.s32.totalorder %s383, %s384
      %p395 = scmp.eq.s32.totalorder %s32, 0
      %p396 = por %p394, %p395
      %p397 = scmp.ne.s32.totalorder %s383, %s384
      %p398 = scmp.eq.s32.totalorder %s33, 1
      %p399 = por %p397, %p398
      %p401 = scmp.ne.s32.totalorder %s384, %s400
      %p402 = scmp.eq.s32.totalorder %s33, 0
      %p403 = por %p401, %p402
      %p404 = scmp.le.s32.totalorder 1, %s27
      %p405 = scmp.lt.s32.totalorder %s27, 3
      %p406 = pnand %p404, %p405
      %p407 = pneg %p406
      // Predicated region
      $region9: #{tpu_custom_call.1} parent=5 // pred_check
        _
      $region10: #{tpu_custom_call.1} parent=5 // pred_check_branch
        %409 = sbr.rel (%p406) target = $region12
      $region11: #{tpu_custom_call.1} parent=5 // pred_region
        %s410 = ssub.s32 %s27, 1
        // Predicated region
        $region13: #{tpu_custom_call.1} parent=11 // pred_check
          %p411 = pneg %p151
        $region14: #{tpu_custom_call.1} parent=11 // pred_check_branch
          %413 = sbr.rel (%p411) target = $region16
        $region15: #{tpu_custom_call.1} parent=11 // pred_region
          _
        $region16: #{tpu_custom_call.1} parent=11 // pred_fallthru
          _
        // Predicated region
        $region17: #{tpu_custom_call.1} parent=11 // pred_check
          %p414 = pneg %p172
        $region18: #{tpu_custom_call.1} parent=11 // pred_check_branch
          %416 = sbr.rel (%p414) target = $region20
        $region19: #{tpu_custom_call.1} parent=11 // pred_region
          _
        $region20: #{tpu_custom_call.1} parent=11 // pred_fallthru
          _
        // Predicated region
        $region21: #{tpu_custom_call.1} parent=11 // pred_check
          %p417 = pneg %p193
        $region22: #{tpu_custom_call.1} parent=11 // pred_check_branch
          %419 = sbr.rel (%p417) target = $region24
        $region23: #{tpu_custom_call.1} parent=11 // pred_region
          _
        $region24: #{tpu_custom_call.1} parent=11 // pred_fallthru
          _
        // Predicated region
        $region25: #{tpu_custom_call.1} parent=11 // pred_check
          %p420 = pneg %p214
        $region26: #{tpu_custom_call.1} parent=11 // pred_check_branch
          %422 = sbr.rel (%p420) target = $region28
        $region27: #{tpu_custom_call.1} parent=11 // pred_region
          _
        $region28: #{tpu_custom_call.1} parent=11 // pred_fallthru
          _
        // Predicated region
        $region29: #{tpu_custom_call.1} parent=11 // pred_check
          %p423 = pneg %p235
        $region30: #{tpu_custom_call.1} parent=11 // pred_check_branch
          %425 = sbr.rel (%p423) target = $region32
        $region31: #{tpu_custom_call.1} parent=11 // pred_region
          _
        $region32: #{tpu_custom_call.1} parent=11 // pred_fallthru
          _
        // Predicated region
        $region33: #{tpu_custom_call.1} parent=11 // pred_check
          %p426 = pneg %p256
        $region34: #{tpu_custom_call.1} parent=11 // pred_check_branch
          %428 = sbr.rel (%p426) target = $region36
        $region35: #{tpu_custom_call.1} parent=11 // pred_region
          _
        $region36: #{tpu_custom_call.1} parent=11 // pred_fallthru
          _
        // Predicated region
        $region37: #{tpu_custom_call.1} parent=11 // pred_check
          %p429 = pneg %p277
        $region38: #{tpu_custom_call.1} parent=11 // pred_check_branch
          %431 = sbr.rel (%p429) target = $region40
        $region39: #{tpu_custom_call.1} parent=11 // pred_region
          _
        $region40: #{tpu_custom_call.1} parent=11 // pred_fallthru
          _
        // Predicated region
        $region41: #{tpu_custom_call.1} parent=11 // pred_check
          %p432 = pneg %p298
        $region42: #{tpu_custom_call.1} parent=11 // pred_check_branch
          %434 = sbr.rel (%p432) target = $region44
        $region43: #{tpu_custom_call.1} parent=11 // pred_region
          _
        $region44: #{tpu_custom_call.1} parent=11 // pred_fallthru
          _
        // Predicated region
        $region45: #{tpu_custom_call.1} parent=11 // pred_check
          %p435 = pneg %p319
        $region46: #{tpu_custom_call.1} parent=11 // pred_check_branch
          %437 = sbr.rel (%p435) target = $region48
        $region47: #{tpu_custom_call.1} parent=11 // pred_region
          _
        $region48: #{tpu_custom_call.1} parent=11 // pred_fallthru
          _
        // Predicated region
        $region49: #{tpu_custom_call.1} parent=11 // pred_check
          %p438 = pneg %p340
        $region50: #{tpu_custom_call.1} parent=11 // pred_check_branch
          %440 = sbr.rel (%p438) target = $region52
        $region51: #{tpu_custom_call.1} parent=11 // pred_region
          _
        $region52: #{tpu_custom_call.1} parent=11 // pred_fallthru
          _
      $region12: #{tpu_custom_call.1} parent=5 // pred_fallthru
        _
      %p441 = scmp.lt.s32.totalorder %s27, 2
      // Predicated region
      $region53: #{tpu_custom_call.1} parent=5 // pred_check
        %p442 = pneg %p441
      $region54: #{tpu_custom_call.1} parent=5 // pred_check_branch
        %444 = sbr.rel (%p442) target = $region56
      $region55: #{tpu_custom_call.1} parent=5 // pred_region
        // Predicated region
        $region57: #{tpu_custom_call.1} parent=55 // pred_check
          %p445 = pneg %p68
        $region58: #{tpu_custom_call.1} parent=55 // pred_check_branch
          %447 = sbr.rel (%p445) target = $region60
        $region59: #{tpu_custom_call.1} parent=55 // pred_region
          %p448 = scmp.lt.s32.totalorder %s34, 1
          %s449 = scalar_select %p448, %s34, 1
          %p450 = scmp.lt.s32.totalorder %s35, 0
          %s451 = scalar_select %p450, %s35, 0
          %s452 = sadd.s32 %s451, %s449
          %s453 = smul.addr %s452, 8
          %s454 = scalar_lea.vmem %s0, %s453
        $region60: #{tpu_custom_call.1} parent=55 // pred_fallthru
          _
        // Predicated region
        $region61: #{tpu_custom_call.1} parent=55 // pred_check
          %p455 = pneg %p96
        $region62: #{tpu_custom_call.1} parent=55 // pred_check_branch
          %457 = sbr.rel (%p455) target = $region64
        $region63: #{tpu_custom_call.1} parent=55 // pred_region
          %p458 = scmp.lt.s32.totalorder %s34, 1
          %s459 = scalar_select %p458, %s34, 1
          %p460 = scmp.lt.s32.totalorder %s36, 0
          %s461 = scalar_select %p460, %s36, 0
          %s462 = sadd.s32 %s461, %s459
          %s463 = smul.addr %s462, 8
          %s464 = scalar_lea.vmem %s1, %s463
        $region64: #{tpu_custom_call.1} parent=55 // pred_fallthru
          _
        // Predicated region
        $region65: #{tpu_custom_call.1} parent=55 // pred_check
          %p465 = pneg %p124
        $region66: #{tpu_custom_call.1} parent=55 // pred_check_branch
          %467 = sbr.rel (%p465) target = $region68
        $region67: #{tpu_custom_call.1} parent=55 // pred_region
          %p468 = scmp.lt.s32.totalorder %s34, 1
          %s469 = scalar_select %p468, %s34, 1
          %p470 = scmp.lt.s32.totalorder %s36, 0
          %s471 = scalar_select %p470, %s36, 0
          %s472 = sadd.s32 %s471, %s469
          %s473 = scalar_lea.vmem %s2, %s472
        $region68: #{tpu_custom_call.1} parent=55 // pred_fallthru
          _
      $region56: #{tpu_custom_call.1} parent=5 // pred_fallthru
        _
      %p474 = scmp.le.s32.totalorder 1, %s27
      %p475 = scmp.lt.s32.totalorder %s27, 3
      %p476 = pnand %p474, %p475
      %p477 = pneg %p476
      // Predicated region
      $region69: #{tpu_custom_call.1} parent=5 // pred_check
        _
      $region70: #{tpu_custom_call.1} parent=5 // pred_check_branch
        %479 = sbr.rel (%p476) target = $region72
      $region71: #{tpu_custom_call.1} parent=5 // pred_region
        %s480 = ssub.s32 %s27, 1
        %p481 = scmp.lt.s32.totalorder %s37, 1
        %s482 = scalar_select %p481, %s37, 1
        %p483 = scmp.lt.s32.totalorder %s38, 0
        %s484 = scalar_select %p483, %s38, 0
        %s485 = sadd.s32 %s484, %s482
        %s486 = smul.addr %s485, 8
        %s487 = scalar_lea.vmem %s0, %s486
        %p488 = pneg %p74
        %p489 = pneg %p71
        %p490 = scmp.lt.s32.totalorder %s37, 1
        %s491 = scalar_select %p490, %s37, 1
        %p492 = scmp.lt.s32.totalorder %s39, 0
        %s493 = scalar_select %p492, %s39, 0
        %s494 = sadd.s32 %s493, %s491
        %s495 = smul.addr %s494, 8
        %s496 = scalar_lea.vmem %s1, %s495
        %p497 = pneg %p102
        %p498 = pneg %p99
        %p499 = scmp.lt.s32.totalorder %s37, 1
        %s500 = scalar_select %p499, %s37, 1
        %p501 = scmp.lt.s32.totalorder %s39, 0
        %s502 = scalar_select %p501, %s39, 0
        %s503 = sadd.s32 %s502, %s500
        %s504 = scalar_lea.vmem %s2, %s503
        %p505 = pneg %p130
        %p506 = pneg %p127
        %p507 = pneg %p151
        %p508 = pneg %p148
        %p509 = pneg %p172
        %p510 = pneg %p169
        %p511 = pneg %p193
        %p512 = pneg %p190
        %p513 = pneg %p214
        %p514 = pneg %p211
        %p515 = pneg %p235
        %p516 = pneg %p232
        %p517 = pneg %p256
        %p518 = pneg %p253
        %p519 = pneg %p277
        %p520 = pneg %p274
        %p521 = pneg %p298
        %p522 = pneg %p295
        %p523 = pneg %p319
        %p524 = pneg %p316
        %p525 = pneg %p340
        %p526 = pneg %p337
        %p527 = pneg %p368
        %p528 = pneg %p365
        %s529 = sand.u32 %s355, 1
        %s530 = scalar_lea.sflag [#allocation7], %s529
        %s531 = sand.u32 %s355, 1
        %s532 = smul.addr %s531, 8
        %s533 = scalar_lea.vmem [#allocation6], %s532
        %p534 = pneg %p396
        %p535 = pneg %p393
        %s536 = sand.u32 %s383, 1
        %s537 = scalar_lea.sflag [#allocation9], %s536
        %s538 = sand.u32 %s383, 1
        %s539 = smul.addr %s538, 8
        %s540 = scalar_lea.vmem [#allocation8], %s539
        %p541 = scmp.lt.s32.totalorder %s37, 1
        %s542 = scalar_select %p541, %s37, 1
        %p543 = scmp.lt.s32.totalorder %s38, 0
        %s544 = scalar_select %p543, %s38, 0
        %s545 = sadd.s32 %s544, %s542
        %s546 = smul.addr %s545, 8
        %s547 = scalar_lea.vmem %s0, %s546
        %p548 = scmp.lt.s32.totalorder %s37, 1
        %s549 = scalar_select %p548, %s37, 1
        %p550 = scmp.lt.s32.totalorder %s39, 0
        %s551 = scalar_select %p550, %s39, 0
        %s552 = sadd.s32 %s551, %s549
        %s553 = smul.addr %s552, 8
        %s554 = scalar_lea.vmem %s1, %s553
        %p555 = scmp.lt.s32.totalorder %s37, 1
        %s556 = scalar_select %p555, %s37, 1
        %p557 = scmp.lt.s32.totalorder %s39, 0
        %s558 = scalar_select %p557, %s39, 0
        %s559 = sadd.s32 %s558, %s556
        %s560 = scalar_lea.vmem %s2, %s559
        %p562 = scmp.eq.s32.totalorder %s39, 0
        // Predicated region
        $region73: #{tpu_custom_call.1} parent=71 // pred_check
          %p563 = pneg %p562
        $region74: #{tpu_custom_call.1} parent=71 // pred_check_branch
          %565 = sbr.rel (%p563) target = $region76
        $region75: #{tpu_custom_call.1} parent=71 // pred_region
          %v566 = vld [vmem:[%s547] sm:$0xff]
          %v567 = vld [vmem:[%s3] sm:$0x1]
          %v568 = vld [vmem:[%s4] sm:$0x1]
          %vm569 = vcmask 261120
          %v570 = vsel %vm569, %v566, 0.0
          %571 = vadd.xlane.f32.xlu0 %v570
          %v572 = vpop.xlane.xlu0 %571
          %v573 = vrcp.pop 32.0
          %v574 = vmul.f32 32.0, %v573
          %v575 = vsub.f32 1.0, %v574
          %v576 = vmul.f32 %v573, %v575
          %v577 = vadd.f32 %v573, %v576
          %vm578 = vweird.f32 %v573
          %v579 = vsel %vm578, %v573, %v577
          %v580 = vmul.f32 %v572, %v579
          %v581 = vsub.f32 %v566, %v580
          %v582 = vmul.f32 %v581, %v581
          %v583 = vsel %vm569, %v582, 0.0
          %584 = vadd.xlane.f32.xlu0 %v583
          %v585 = vpop.xlane.xlu0 %584
          %v586 = vmul.f32 %v585, %v579
          %v587 = vadd.f32 %v586, 1e-06
          %v588 = vrsqrt.pop %v587
          %v589 = vmul.f32 %v588, %v587
          %v590 = vmul.f32 %v589, %v588
          %v591 = vmul.f32 0.5, %v590
          %v592 = vsub.f32 1.5, %v591
          %v593 = vmul.f32 %v588, %v592
          %vm594 = vweird.f32 %v587
          %vm595 = vweird.f32 %v588
          %vm596 = vmor %vm594, %vm595
          %v597 = vsel %vm596, %v588, %v593
          %v598 = vmul.f32 %v581, %v597
          %v600 = vperm.slane %v567, 0
          %v602 = vmul.f32 %v598, %v600
          %v604 = vperm.slane %v568, 0
          %v606 = vadd.f32 %v602, %v604
          %607 = vst.msk [vmem:[%s540] sm:$0xff] %vm569, %v606
          %v608 = vpack.c.bf16 %v606, %v606
          %v609 = vld [vmem:[%s5] sm:$0xf]
          %v610 = vld [vmem:[%s5 + $0x4] sm:$0xf]
          %v611 = vld [vmem:[%s5 + $0x8] sm:$0xf]
          %v612 = vld [vmem:[%s5 + $0xc] sm:$0xf]
          %v613 = vld [vmem:[%s5 + $0x10] sm:$0xf]
          %v614 = vld [vmem:[%s5 + $0x14] sm:$0xf]
          %v615 = vld [vmem:[%s5 + $0x18] sm:$0xf]
          %v616 = vld [vmem:[%s5 + $0x1c] sm:$0xf]
          %v617 = vld [vmem:[%s5 + $0x20] sm:$0xf]
          %v618 = vld [vmem:[%s5 + $0x24] sm:$0xf]
          %v619 = vld [vmem:[%s5 + $0x28] sm:$0xf]
          %v620 = vld [vmem:[%s5 + $0x2c] sm:$0xf]
          %v621 = vld [vmem:[%s5 + $0x30] sm:$0xf]
          %v622 = vld [vmem:[%s5 + $0x34] sm:$0xf]
          %v623 = vld [vmem:[%s5 + $0x38] sm:$0xf]
          %v624 = vld [vmem:[%s5 + $0x3c] sm:$0xf]
          %v625 = vld [vmem:[%s6] sm:$0x1]
          %v626 = vld [vmem:[%s6 + $0x1] sm:$0x1]
          %v627 = vld [vmem:[%s6 + $0x2] sm:$0x1]
          %v628 = vld [vmem:[%s6 + $0x3] sm:$0x1]
          %v633 = vperm.slane %v625, 0
          %v634 = vperm.slane %v626, 0
          %v635 = vperm.slane %v627, 0
          %v636 = vperm.slane %v628, 0
          %v645 = vunpack.c.l.b16 %v609
          %v646 = vunpack.c.l.b16 %v610
          %v647 = vunpack.c.l.b16 %v611
          %v648 = vunpack.c.l.b16 %v612
          %v649 = vpack.c.b16 %v646, %v645
          %v650 = vpack.c.b16 %v648, %v647
          %v654 = vsel %vm569, %v608, 0
          %656 = vmatpush.bf16.msra.mxu0 0
          %657 = vmatpush.bf16.msra.mxu0 0
          %658 = vmatpush.bf16.msra.mxu0 0
          %659 = vmatpush.bf16.msra.mxu0 0
          %660 = vmatpush.bf16.msra.mxu0 0
          %661 = vmatpush.bf16.msra.mxu0 0
          %662 = vmatpush.bf16.msra.mxu0 %v650
          %663 = vmatpush.bf16.msra.mxu0 %v649
          %664 = vmatmul.bf16.gmra.mxu0 %v654
          %v665 = vpop.f32.mrf.mxu0
          %v666 = vadd.f32 %v633, %v665
          %v667 = vpop.f32.mrf.mxu0
          %668 = vdwg.mxu0
          %v673 = vunpack.c.l.b16 %v613
          %v674 = vunpack.c.l.b16 %v614
          %v675 = vunpack.c.l.b16 %v615
          %v676 = vunpack.c.l.b16 %v616
          %v677 = vpack.c.b16 %v674, %v673
          %v678 = vpack.c.b16 %v676, %v675
          %681 = vmatpush.bf16.msra.mxu0 0
          %682 = vmatpush.bf16.msra.mxu0 0
          %683 = vmatpush.bf16.msra.mxu0 0
          %684 = vmatpush.bf16.msra.mxu0 0
          %685 = vmatpush.bf16.msra.mxu0 0
          %686 = vmatpush.bf16.msra.mxu0 0
          %687 = vmatpush.bf16.msra.mxu0 %v678
          %688 = vmatpush.bf16.msra.mxu0 %v677
          %689 = vmatmul.bf16.gmra.mxu0 %v654
          %v690 = vpop.f32.mrf.mxu0
          %v691 = vadd.f32 %v634, %v690
          %v692 = vpop.f32.mrf.mxu0
          %693 = vdwg.mxu0
          %v698 = vunpack.c.l.b16 %v617
          %v699 = vunpack.c.l.b16 %v618
          %v700 = vunpack.c.l.b16 %v619
          %v701 = vunpack.c.l.b16 %v620
          %v702 = vpack.c.b16 %v699, %v698
          %v703 = vpack.c.b16 %v701, %v700
          %706 = vmatpush.bf16.msra.mxu0 0
          %707 = vmatpush.bf16.msra.mxu0 0
          %708 = vmatpush.bf16.msra.mxu0 0
          %709 = vmatpush.bf16.msra.mxu0 0
          %710 = vmatpush.bf16.msra.mxu0 0
          %711 = vmatpush.bf16.msra.mxu0 0
          %712 = vmatpush.bf16.msra.mxu0 %v703
          %713 = vmatpush.bf16.msra.mxu0 %v702
          %714 = vmatmul.bf16.gmra.mxu0 %v654
          %v715 = vpop.f32.mrf.mxu0
          %v716 = vadd.f32 %v635, %v715
          %v717 = vpop.f32.mrf.mxu0
          %718 = vdwg.mxu0
          %v723 = vunpack.c.l.b16 %v621
          %v724 = vunpack.c.l.b16 %v622
          %v725 = vunpack.c.l.b16 %v623
          %v726 = vunpack.c.l.b16 %v624
          %v727 = vpack.c.b16 %v724, %v723
          %v728 = vpack.c.b16 %v726, %v725
          %731 = vmatpush.bf16.msra.mxu0 0
          %732 = vmatpush.bf16.msra.mxu0 0
          %733 = vmatpush.bf16.msra.mxu0 0
          %734 = vmatpush.bf16.msra.mxu0 0
          %735 = vmatpush.bf16.msra.mxu0 0
          %736 = vmatpush.bf16.msra.mxu0 0
          %737 = vmatpush.bf16.msra.mxu0 %v728
          %738 = vmatpush.bf16.msra.mxu0 %v727
          %739 = vmatmul.bf16.gmra.mxu0 %v654
          %v740 = vpop.f32.mrf.mxu0
          %v741 = vadd.f32 %v636, %v740
          %v742 = vpop.f32.mrf.mxu0
          %743 = vdwg.mxu0
          %v744 = vmul.f32 %v666, 0.35355338
          %v745 = vmul.f32 %v691, 0.35355338
          %v746 = vmul.f32 %v716, 0.35355338
          %v747 = vmul.f32 %v741, 0.35355338
          %vm748 = vcmask 64512
          %749 = vst.msk [vmem:[#allocation2] sm:$0xff] %vm748, %v744
          %750 = vst.msk [vmem:[#allocation2 + $0x8] sm:$0xff] %vm748, %v745
          %751 = vst.msk [vmem:[#allocation2 + $0x10] sm:$0xff] %vm748, %v746
          %752 = vst.msk [vmem:[#allocation2 + $0x18] sm:$0xff] %vm748, %v747
          %vm753 = vcmask 7168
          %754 = vst.msk [vmem:[#allocation3] sm:$0xff] %vm753, -inf
          %755 = vst.msk [vmem:[#allocation3 + $0x8] sm:$0xff] %vm753, -inf
          %756 = vst.msk [vmem:[#allocation3 + $0x10] sm:$0xff] %vm753, -inf
          %757 = vst.msk [vmem:[#allocation3 + $0x18] sm:$0xff] %vm753, -inf
          %758 = vst.msk [vmem:[#allocation4] sm:$0xff] %vm753, 0.0
          %759 = vst.msk [vmem:[#allocation4 + $0x8] sm:$0xff] %vm753, 0.0
          %760 = vst.msk [vmem:[#allocation4 + $0x10] sm:$0xff] %vm753, 0.0
          %761 = vst.msk [vmem:[#allocation4 + $0x18] sm:$0xff] %vm753, 0.0
          %762 = vst.msk [vmem:[#allocation5] sm:$0xff] %vm748, 0.0
          %763 = vst.msk [vmem:[#allocation5 + $0x8] sm:$0xff] %vm748, 0.0
          %764 = vst.msk [vmem:[#allocation5 + $0x10] sm:$0xff] %vm748, 0.0
          %765 = vst.msk [vmem:[#allocation5 + $0x18] sm:$0xff] %vm748, 0.0
        $region76: #{tpu_custom_call.1} parent=71 // pred_fallthru
          _
        %v766 = vld [vmem:[%s554] sm:$0xff]
        %v767 = vld [vmem:[%s3] sm:$0x1]
        %v768 = vld [vmem:[%s4] sm:$0x1]
        %vm769 = vcmask 261120
        %v770 = vsel %vm769, %v766, 0.0
        %771 = vadd.xlane.f32.xlu0 %v770
        %v772 = vpop.xlane.xlu0 %771
        %v773 = vrcp.pop 32.0
        %v774 = vmul.f32 32.0, %v773
        %v775 = vsub.f32 1.0, %v774
        %v776 = vmul.f32 %v773, %v775
        %v777 = vadd.f32 %v773, %v776
        %vm778 = vweird.f32 %v773
        %v779 = vsel %vm778, %v773, %v777
        %v780 = vmul.f32 %v772, %v779
        %v781 = vsub.f32 %v766, %v780
        %v782 = vmul.f32 %v781, %v781
        %v783 = vsel %vm769, %v782, 0.0
        %784 = vadd.xlane.f32.xlu0 %v783
        %v785 = vpop.xlane.xlu0 %784
        %v786 = vmul.f32 %v785, %v779
        %v787 = vadd.f32 %v786, 1e-06
        %v788 = vrsqrt.pop %v787
        %v789 = vmul.f32 %v788, %v787
        %v790 = vmul.f32 %v789, %v788
        %v791 = vmul.f32 0.5, %v790
        %v792 = vsub.f32 1.5, %v791
        %v793 = vmul.f32 %v788, %v792
        %vm794 = vweird.f32 %v787
        %vm795 = vweird.f32 %v788
        %vm796 = vmor %vm794, %vm795
        %v797 = vsel %vm796, %v788, %v793
        %v798 = vmul.f32 %v781, %v797
        %v800 = vperm.slane %v767, 0
        %v802 = vmul.f32 %v798, %v800
        %v804 = vperm.slane %v768, 0
        %v806 = vadd.f32 %v802, %v804
        %v807 = vpack.c.bf16 %v806, %v806
        %v808 = vld [vmem:[%s7] sm:$0xf]
        %v809 = vld [vmem:[%s7 + $0x4] sm:$0xf]
        %v810 = vld [vmem:[%s7 + $0x8] sm:$0xf]
        %v811 = vld [vmem:[%s7 + $0xc] sm:$0xf]
        %v812 = vld [vmem:[%s7 + $0x10] sm:$0xf]
        %v813 = vld [vmem:[%s7 + $0x14] sm:$0xf]
        %v814 = vld [vmem:[%s7 + $0x18] sm:$0xf]
        %v815 = vld [vmem:[%s7 + $0x1c] sm:$0xf]
        %v816 = vld [vmem:[%s7 + $0x20] sm:$0xf]
        %v817 = vld [vmem:[%s7 + $0x24] sm:$0xf]
        %v818 = vld [vmem:[%s7 + $0x28] sm:$0xf]
        %v819 = vld [vmem:[%s7 + $0x2c] sm:$0xf]
        %v820 = vld [vmem:[%s7 + $0x30] sm:$0xf]
        %v821 = vld [vmem:[%s7 + $0x34] sm:$0xf]
        %v822 = vld [vmem:[%s7 + $0x38] sm:$0xf]
        %v823 = vld [vmem:[%s7 + $0x3c] sm:$0xf]
        %v824 = vld [vmem:[%s8] sm:$0x1]
        %v825 = vld [vmem:[%s8 + $0x1] sm:$0x1]
        %v826 = vld [vmem:[%s8 + $0x2] sm:$0x1]
        %v827 = vld [vmem:[%s8 + $0x3] sm:$0x1]
        %v832 = vperm.slane %v824, 0
        %v833 = vperm.slane %v825, 0
        %v834 = vperm.slane %v826, 0
        %v835 = vperm.slane %v827, 0
        %v844 = vunpack.c.l.b16 %v808
        %v845 = vunpack.c.l.b16 %v809
        %v846 = vunpack.c.l.b16 %v810
        %v847 = vunpack.c.l.b16 %v811
        %v848 = vpack.c.b16 %v845, %v844
        %v849 = vpack.c.b16 %v847, %v846
        %v853 = vsel %vm769, %v807, 0
        %855 = vmatpush.bf16.msra.mxu0 0
        %856 = vmatpush.bf16.msra.mxu0 0
        %857 = vmatpush.bf16.msra.mxu0 0
        %858 = vmatpush.bf16.msra.mxu0 0
        %859 = vmatpush.bf16.msra.mxu0 0
        %860 = vmatpush.bf16.msra.mxu0 0
        %861 = vmatpush.bf16.msra.mxu0 %v849
        %862 = vmatpush.bf16.msra.mxu0 %v848
        %863 = vmatmul.bf16.gmra.mxu0 %v853
        %v864 = vpop.f32.mrf.mxu0
        %v865 = vadd.f32 %v832, %v864
        %v866 = vpop.f32.mrf.mxu0
        %867 = vdwg.mxu0
        %v872 = vunpack.c.l.b16 %v812
        %v873 = vunpack.c.l.b16 %v813
        %v874 = vunpack.c.l.b16 %v814
        %v875 = vunpack.c.l.b16 %v815
        %v876 = vpack.c.b16 %v873, %v872
        %v877 = vpack.c.b16 %v875, %v874
        %880 = vmatpush.bf16.msra.mxu0 0
        %881 = vmatpush.bf16.msra.mxu0 0
        %882 = vmatpush.bf16.msra.mxu0 0
        %883 = vmatpush.bf16.msra.mxu0 0
        %884 = vmatpush.bf16.msra.mxu0 0
        %885 = vmatpush.bf16.msra.mxu0 0
        %886 = vmatpush.bf16.msra.mxu0 %v877
        %887 = vmatpush.bf16.msra.mxu0 %v876
        %888 = vmatmul.bf16.gmra.mxu0 %v853
        %v889 = vpop.f32.mrf.mxu0
        %v890 = vadd.f32 %v833, %v889
        %v891 = vpop.f32.mrf.mxu0
        %892 = vdwg.mxu0
        %v897 = vunpack.c.l.b16 %v816
        %v898 = vunpack.c.l.b16 %v817
        %v899 = vunpack.c.l.b16 %v818
        %v900 = vunpack.c.l.b16 %v819
        %v901 = vpack.c.b16 %v898, %v897
        %v902 = vpack.c.b16 %v900, %v899
        %905 = vmatpush.bf16.msra.mxu0 0
        %906 = vmatpush.bf16.msra.mxu0 0
        %907 = vmatpush.bf16.msra.mxu0 0
        %908 = vmatpush.bf16.msra.mxu0 0
        %909 = vmatpush.bf16.msra.mxu0 0
        %910 = vmatpush.bf16.msra.mxu0 0
        %911 = vmatpush.bf16.msra.mxu0 %v902
        %912 = vmatpush.bf16.msra.mxu0 %v901
        %913 = vmatmul.bf16.gmra.mxu0 %v853
        %v914 = vpop.f32.mrf.mxu0
        %v915 = vadd.f32 %v834, %v914
        %v916 = vpop.f32.mrf.mxu0
        %917 = vdwg.mxu0
        %v922 = vunpack.c.l.b16 %v820
        %v923 = vunpack.c.l.b16 %v821
        %v924 = vunpack.c.l.b16 %v822
        %v925 = vunpack.c.l.b16 %v823
        %v926 = vpack.c.b16 %v923, %v922
        %v927 = vpack.c.b16 %v925, %v924
        %930 = vmatpush.bf16.msra.mxu0 0
        %931 = vmatpush.bf16.msra.mxu0 0
        %932 = vmatpush.bf16.msra.mxu0 0
        %933 = vmatpush.bf16.msra.mxu0 0
        %934 = vmatpush.bf16.msra.mxu0 0
        %935 = vmatpush.bf16.msra.mxu0 0
        %936 = vmatpush.bf16.msra.mxu0 %v927
        %937 = vmatpush.bf16.msra.mxu0 %v926
        %938 = vmatmul.bf16.gmra.mxu0 %v853
        %v939 = vpop.f32.mrf.mxu0
        %v940 = vadd.f32 %v835, %v939
        %v941 = vpop.f32.mrf.mxu0
        %942 = vdwg.mxu0
        %v943 = vpack.c.bf16 %v865, %v865
        %v944 = vpack.c.bf16 %v890, %v890
        %v945 = vpack.c.bf16 %v915, %v915
        %v946 = vpack.c.bf16 %v940, %v940
        %v947 = vld [vmem:[%s9] sm:$0xf]
        %v948 = vld [vmem:[%s9 + $0x4] sm:$0xf]
        %v949 = vld [vmem:[%s9 + $0x8] sm:$0xf]
        %v950 = vld [vmem:[%s9 + $0xc] sm:$0xf]
        %v951 = vld [vmem:[%s9 + $0x10] sm:$0xf]
        %v952 = vld [vmem:[%s9 + $0x14] sm:$0xf]
        %v953 = vld [vmem:[%s9 + $0x18] sm:$0xf]
        %v954 = vld [vmem:[%s9 + $0x1c] sm:$0xf]
        %v955 = vld [vmem:[%s9 + $0x20] sm:$0xf]
        %v956 = vld [vmem:[%s9 + $0x24] sm:$0xf]
        %v957 = vld [vmem:[%s9 + $0x28] sm:$0xf]
        %v958 = vld [vmem:[%s9 + $0x2c] sm:$0xf]
        %v959 = vld [vmem:[%s9 + $0x30] sm:$0xf]
        %v960 = vld [vmem:[%s9 + $0x34] sm:$0xf]
        %v961 = vld [vmem:[%s9 + $0x38] sm:$0xf]
        %v962 = vld [vmem:[%s9 + $0x3c] sm:$0xf]
        %v963 = vld [vmem:[%s10] sm:$0x1]
        %v964 = vld [vmem:[%s10 + $0x1] sm:$0x1]
        %v965 = vld [vmem:[%s10 + $0x2] sm:$0x1]
        %v966 = vld [vmem:[%s10 + $0x3] sm:$0x1]
        %v971 = vperm.slane %v963, 0
        %v972 = vperm.slane %v964, 0
        %v973 = vperm.slane %v965, 0
        %v974 = vperm.slane %v966, 0
        %v983 = vunpack.c.l.b16 %v947
        %v984 = vunpack.c.l.b16 %v948
        %v985 = vunpack.c.l.b16 %v949
        %v986 = vunpack.c.l.b16 %v950
        %v987 = vpack.c.b16 %v984, %v983
        %v988 = vpack.c.b16 %v986, %v985
        %991 = vmatpush.bf16.msra.mxu0 0
        %992 = vmatpush.bf16.msra.mxu0 0
        %993 = vmatpush.bf16.msra.mxu0 0
        %994 = vmatpush.bf16.msra.mxu0 0
        %995 = vmatpush.bf16.msra.mxu0 0
        %996 = vmatpush.bf16.msra.mxu0 0
        %997 = vmatpush.bf16.msra.mxu0 %v988
        %998 = vmatpush.bf16.msra.mxu0 %v987
        %999 = vmatmul.bf16.gmra.mxu0 %v853
        %v1000 = vpop.f32.mrf.mxu0
        %v1001 = vadd.f32 %v971, %v1000
        %v1002 = vpop.f32.mrf.mxu0
        %1003 = vdwg.mxu0
        %v1008 = vunpack.c.l.b16 %v951
        %v1009 = vunpack.c.l.b16 %v952
        %v1010 = vunpack.c.l.b16 %v953
        %v1011 = vunpack.c.l.b16 %v954
        %v1012 = vpack.c.b16 %v1009, %v1008
        %v1013 = vpack.c.b16 %v1011, %v1010
        %1016 = vmatpush.bf16.msra.mxu0 0
        %1017 = vmatpush.bf16.msra.mxu0 0
        %1018 = vmatpush.bf16.msra.mxu0 0
        %1019 = vmatpush.bf16.msra.mxu0 0
        %1020 = vmatpush.bf16.msra.mxu0 0
        %1021 = vmatpush.bf16.msra.mxu0 0
        %1022 = vmatpush.bf16.msra.mxu0 %v1013
        %1023 = vmatpush.bf16.msra.mxu0 %v1012
        %1024 = vmatmul.bf16.gmra.mxu0 %v853
        %v1025 = vpop.f32.mrf.mxu0
        %v1026 = vadd.f32 %v972, %v1025
        %v1027 = vpop.f32.mrf.mxu0
        %1028 = vdwg.mxu0
        %v1033 = vunpack.c.l.b16 %v955
        %v1034 = vunpack.c.l.b16 %v956
        %v1035 = vunpack.c.l.b16 %v957
        %v1036 = vunpack.c.l.b16 %v958
        %v1037 = vpack.c.b16 %v1034, %v1033
        %v1038 = vpack.c.b16 %v1036, %v1035
        %1041 = vmatpush.bf16.msra.mxu0 0
        %1042 = vmatpush.bf16.msra.mxu0 0
        %1043 = vmatpush.bf16.msra.mxu0 0
        %1044 = vmatpush.bf16.msra.mxu0 0
        %1045 = vmatpush.bf16.msra.mxu0 0
        %1046 = vmatpush.bf16.msra.mxu0 0
        %1047 = vmatpush.bf16.msra.mxu0 %v1038
        %1048 = vmatpush.bf16.msra.mxu0 %v1037
        %1049 = vmatmul.bf16.gmra.mxu0 %v853
        %v1050 = vpop.f32.mrf.mxu0
        %v1051 = vadd.f32 %v973, %v1050
        %v1052 = vpop.f32.mrf.mxu0
        %1053 = vdwg.mxu0
        %v1058 = vunpack.c.l.b16 %v959
        %v1059 = vunpack.c.l.b16 %v960
        %v1060 = vunpack.c.l.b16 %v961
        %v1061 = vunpack.c.l.b16 %v962
        %v1062 = vpack.c.b16 %v1059, %v1058
        %v1063 = vpack.c.b16 %v1061, %v1060
        %1066 = vmatpush.bf16.msra.mxu0 0
        %1067 = vmatpush.bf16.msra.mxu0 0
        %1068 = vmatpush.bf16.msra.mxu0 0
        %1069 = vmatpush.bf16.msra.mxu0 0
        %1070 = vmatpush.bf16.msra.mxu0 0
        %1071 = vmatpush.bf16.msra.mxu0 0
        %1072 = vmatpush.bf16.msra.mxu0 %v1063
        %1073 = vmatpush.bf16.msra.mxu0 %v1062
        %1074 = vmatmul.bf16.gmra.mxu0 %v853
        %v1075 = vpop.f32.mrf.mxu0
        %v1076 = vadd.f32 %v974, %v1075
        %v1077 = vpop.f32.mrf.mxu0
        %1078 = vdwg.mxu0
        %v1079 = vpack.c.bf16 %v1001, %v1001
        %v1080 = vpack.c.bf16 %v1026, %v1026
        %v1081 = vpack.c.bf16 %v1051, %v1051
        %v1082 = vpack.c.bf16 %v1076, %v1076
        %v1083 = vld [vmem:[#allocation2] sm:$0xff]
        %v1084 = vld [vmem:[#allocation2 + $0x8] sm:$0xff]
        %v1085 = vld [vmem:[#allocation2 + $0x10] sm:$0xff]
        %v1086 = vld [vmem:[#allocation2 + $0x18] sm:$0xff]
        %v1087 = vpack.c.bf16 %v1083, %v1083
        %v1088 = vpack.c.bf16 %v1084, %v1084
        %v1089 = vpack.c.bf16 %v1085, %v1085
        %v1090 = vpack.c.bf16 %v1086, %v1086
        %vm1091 = vcmask 64512
        %v1093 = vsel %vm1091, %v1087, 0
        %v1096 = vsel %vm1091, %v943, 0
        %1098 = vmatpush.bf16.xpose.msra.mxu0 0
        %1099 = vmatpush.bf16.xpose.msra.mxu0 0
        %1100 = vmatpush.bf16.xpose.msra.mxu0 0
        %1101 = vmatpush.bf16.xpose.msra.mxu0 0
        %1102 = vmatpush.bf16.xpose.msra.mxu0 0
        %1103 = vmatpush.bf16.xpose.msra.mxu0 0
        %1104 = vmatpush.bf16.xpose.msra.mxu0 0
        %1105 = vmatpush.bf16.xpose.msra.mxu0 %v1096
        %1106 = vmatmul.bf16.gmra.mxu0 %v1093
        %v1107 = vpop.f32.mrf.mxu0
        %v1108 = vadd.f32 0.0, %v1107
        %v1109 = vpop.f32.mrf.mxu0
        %1110 = vdwg.mxu0
        %v1112 = vsel %vm1091, %v1088, 0
        %v1115 = vsel %vm1091, %v944, 0
        %1117 = vmatpush.bf16.xpose.msra.mxu0 0
        %1118 = vmatpush.bf16.xpose.msra.mxu0 0
        %1119 = vmatpush.bf16.xpose.msra.mxu0 0
        %1120 = vmatpush.bf16.xpose.msra.mxu0 0
        %1121 = vmatpush.bf16.xpose.msra.mxu0 0
        %1122 = vmatpush.bf16.xpose.msra.mxu0 0
        %1123 = vmatpush.bf16.xpose.msra.mxu0 0
        %1124 = vmatpush.bf16.xpose.msra.mxu0 %v1115
        %1125 = vmatmul.bf16.gmra.mxu0 %v1112
        %v1126 = vpop.f32.mrf.mxu0
        %v1127 = vadd.f32 0.0, %v1126
        %v1128 = vpop.f32.mrf.mxu0
        %1129 = vdwg.mxu0
        %v1131 = vsel %vm1091, %v1089, 0
        %v1134 = vsel %vm1091, %v945, 0
        %1136 = vmatpush.bf16.xpose.msra.mxu0 0
        %1137 = vmatpush.bf16.xpose.msra.mxu0 0
        %1138 = vmatpush.bf16.xpose.msra.mxu0 0
        %1139 = vmatpush.bf16.xpose.msra.mxu0 0
        %1140 = vmatpush.bf16.xpose.msra.mxu0 0
        %1141 = vmatpush.bf16.xpose.msra.mxu0 0
        %1142 = vmatpush.bf16.xpose.msra.mxu0 0
        %1143 = vmatpush.bf16.xpose.msra.mxu0 %v1134
        %1144 = vmatmul.bf16.gmra.mxu0 %v1131
        %v1145 = vpop.f32.mrf.mxu0
        %v1146 = vadd.f32 0.0, %v1145
        %v1147 = vpop.f32.mrf.mxu0
        %1148 = vdwg.mxu0
        %v1150 = vsel %vm1091, %v1090, 0
        %v1153 = vsel %vm1091, %v946, 0
        %1155 = vmatpush.bf16.xpose.msra.mxu0 0
        %1156 = vmatpush.bf16.xpose.msra.mxu0 0
        %1157 = vmatpush.bf16.xpose.msra.mxu0 0
        %1158 = vmatpush.bf16.xpose.msra.mxu0 0
        %1159 = vmatpush.bf16.xpose.msra.mxu0 0
        %1160 = vmatpush.bf16.xpose.msra.mxu0 0
        %1161 = vmatpush.bf16.xpose.msra.mxu0 0
        %1162 = vmatpush.bf16.xpose.msra.mxu0 %v1153
        %1163 = vmatmul.bf16.gmra.mxu0 %v1150
        %v1164 = vpop.f32.mrf.mxu0
        %v1165 = vadd.f32 0.0, %v1164
        %v1166 = vpop.f32.mrf.mxu0
        %1167 = vdwg.mxu0
        %v1168 = vld [vmem:[%s560] sm:$0x1]
        %vm1169 = vcmp.gt.s32.totalorder %v1168, 0
        %v1170 = vsel %vm1169, 1, 0
        %v1171 = vperm.slane %v1170, 0
        %vm1172 = vcmp.eq.s32.totalorder %v1171, 1
        %s1173 = smul.u32 %s38, 8
        %v1174 = vlaneseq
        %v1175 = vshrl.u32 %v1174, 7
        %v1176 = vstv %s1173
        %v1177 = vadd.s32 %v1176, %v1175
        %s1178 = smul.u32 %s39, 8
        %v1179 = vlaneseq
        %v1180 = vand.u32 %v1179, 127
        %v1181 = vstv %s1178
        %v1182 = vadd.s32 %v1181, %v1180
        %vm1183 = vcmp.gt.s32.totalorder %v1182, %v1177
        %vm1184 = vmor %vm1172, %vm1183
        %v1185 = vsel %vm1184, 1, 0
        %vm1186 = vcmp.eq.s32.totalorder %v1185, 1
        %v1187 = vsel %vm1186, -1e+18, %v1108
        %v1188 = vsel %vm1186, -1e+18, %v1127
        %v1189 = vsel %vm1186, -1e+18, %v1146
        %v1190 = vsel %vm1186, -1e+18, %v1165
        %v1191 = vld [vmem:[#allocation3] sm:$0xff]
        %v1192 = vld [vmem:[#allocation3 + $0x8] sm:$0xff]
        %v1193 = vld [vmem:[#allocation3 + $0x10] sm:$0xff]
        %v1194 = vld [vmem:[#allocation3 + $0x18] sm:$0xff]
        %v1195 = vsel %vm1091, %v1187, -inf
        %1196 = vmax.xlane.f32.xlu0 %v1195
        %v1197 = vpop.xlane.xlu0 %1196
        %v1198 = vsel %vm1091, %v1188, -inf
        %1199 = vmax.xlane.f32.xlu0 %v1198
        %v1200 = vpop.xlane.xlu0 %1199
        %v1201 = vsel %vm1091, %v1189, -inf
        %1202 = vmax.xlane.f32.xlu0 %v1201
        %v1203 = vpop.xlane.xlu0 %1202
        %v1204 = vsel %vm1091, %v1190, -inf
        %1205 = vmax.xlane.f32.xlu0 %v1204
        %v1206 = vpop.xlane.xlu0 %1205
        %v1207 = vmax.f32 %v1191, %v1197
        %v1208 = vmax.f32 %v1192, %v1200
        %v1209 = vmax.f32 %v1193, %v1203
        %v1210 = vmax.f32 %v1194, %v1206
        %v1211 = vsub.f32 %v1191, %v1207
        %v1212 = vsub.f32 %v1192, %v1208
        %v1213 = vsub.f32 %v1193, %v1209
        %v1214 = vsub.f32 %v1194, %v1210
        %v1215 = vmul.f32 %v1211, 1.442695
        %v1216 = vpow.pop %v1215
        %v1217 = vmul.f32 %v1212, 1.442695
        %v1218 = vpow.pop %v1217
        %v1219 = vmul.f32 %v1213, 1.442695
        %v1220 = vpow.pop %v1219
        %v1221 = vmul.f32 %v1214, 1.442695
        %v1222 = vpow.pop %v1221
        %1224 = vset.pattern.permute.xlu0 0
        %1225 = vperm.xlu0 %1224, %v1207
        %v1226 = vpop.permute.xlu0 %1225
        %1229 = vset.pattern.permute.xlu0 0
        %1230 = vperm.xlu0 %1229, %v1208
        %v1231 = vpop.permute.xlu0 %1230
        %1234 = vset.pattern.permute.xlu0 0
        %1235 = vperm.xlu0 %1234, %v1209
        %v1236 = vpop.permute.xlu0 %1235
        %1239 = vset.pattern.permute.xlu0 0
        %1240 = vperm.xlu0 %1239, %v1210
        %v1241 = vpop.permute.xlu0 %1240
        %v1243 = vsub.f32 %v1187, %v1226
        %v1244 = vsub.f32 %v1188, %v1231
        %v1245 = vsub.f32 %v1189, %v1236
        %v1246 = vsub.f32 %v1190, %v1241
        %v1247 = vmul.f32 %v1243, 1.442695
        %v1248 = vpow.pop %v1247
        %v1249 = vmul.f32 %v1244, 1.442695
        %v1250 = vpow.pop %v1249
        %v1251 = vmul.f32 %v1245, 1.442695
        %v1252 = vpow.pop %v1251
        %v1253 = vmul.f32 %v1246, 1.442695
        %v1254 = vpow.pop %v1253
        %v1255 = vld [vmem:[#allocation4] sm:$0xff]
        %v1256 = vld [vmem:[#allocation4 + $0x8] sm:$0xff]
        %v1257 = vld [vmem:[#allocation4 + $0x10] sm:$0xff]
        %v1258 = vld [vmem:[#allocation4 + $0x18] sm:$0xff]
        %v1259 = vmul.f32 %v1216, %v1255
        %v1260 = vmul.f32 %v1218, %v1256
        %v1261 = vmul.f32 %v1220, %v1257
        %v1262 = vmul.f32 %v1222, %v1258
        %v1263 = vsel %vm1091, %v1248, 0.0
        %1264 = vadd.xlane.f32.xlu0 %v1263
        %v1265 = vpop.xlane.xlu0 %1264
        %v1266 = vsel %vm1091, %v1250, 0.0
        %1267 = vadd.xlane.f32.xlu0 %v1266
        %v1268 = vpop.xlane.xlu0 %1267
        %v1269 = vsel %vm1091, %v1252, 0.0
        %1270 = vadd.xlane.f32.xlu0 %v1269
        %v1271 = vpop.xlane.xlu0 %1270
        %v1272 = vsel %vm1091, %v1254, 0.0
        %1273 = vadd.xlane.f32.xlu0 %v1272
        %v1274 = vpop.xlane.xlu0 %1273
        %v1275 = vadd.f32 %v1259, %v1265
        %v1276 = vadd.f32 %v1260, %v1268
        %v1277 = vadd.f32 %v1261, %v1271
        %v1278 = vadd.f32 %v1262, %v1274
        %vm1279 = vcmask 7168
        %1280 = vst.msk [vmem:[#allocation4] sm:$0xff] %vm1279, %v1275
        %1281 = vst.msk [vmem:[#allocation4 + $0x8] sm:$0xff] %vm1279, %v1276
        %1282 = vst.msk [vmem:[#allocation4 + $0x10] sm:$0xff] %vm1279, %v1277
        %1283 = vst.msk [vmem:[#allocation4 + $0x18] sm:$0xff] %vm1279, %v1278
        %v1284 = vld [vmem:[#allocation5] sm:$0xff]
        %v1285 = vld [vmem:[#allocation5 + $0x8] sm:$0xff]
        %v1286 = vld [vmem:[#allocation5 + $0x10] sm:$0xff]
        %v1287 = vld [vmem:[#allocation5 + $0x18] sm:$0xff]
        %1289 = vset.pattern.permute.xlu0 0
        %1290 = vperm.xlu0 %1289, %v1216
        %v1291 = vpop.permute.xlu0 %1290
        %1294 = vset.pattern.permute.xlu0 0
        %1295 = vperm.xlu0 %1294, %v1218
        %v1296 = vpop.permute.xlu0 %1295
        %1299 = vset.pattern.permute.xlu0 0
        %1300 = vperm.xlu0 %1299, %v1220
        %v1301 = vpop.permute.xlu0 %1300
        %1304 = vset.pattern.permute.xlu0 0
        %1305 = vperm.xlu0 %1304, %v1222
        %v1306 = vpop.permute.xlu0 %1305
        %v1308 = vmul.f32 %v1291, %v1284
        %v1309 = vmul.f32 %v1296, %v1285
        %v1310 = vmul.f32 %v1301, %v1286
        %v1311 = vmul.f32 %v1306, %v1287
        %v1312 = vpack.c.bf16 %v1248, %v1248
        %v1313 = vpack.c.bf16 %v1250, %v1250
        %v1314 = vpack.c.bf16 %v1252, %v1252
        %v1315 = vpack.c.bf16 %v1254, %v1254
        %v1317 = vsel %vm1091, %v1312, 0
        %vm1319 = vcmask 1043456
        %v1321 = vsel %vm1319, %v1079, 0
        %1323 = vmatpush.bf16.msra.mxu0 0
        %1324 = vmatpush.bf16.msra.mxu0 0
        %1325 = vmatpush.bf16.msra.mxu0 0
        %1326 = vmatpush.bf16.msra.mxu0 0
        %1327 = vmatpush.bf16.msra.mxu0 0
        %1328 = vmatpush.bf16.msra.mxu0 0
        %1329 = vmatpush.bf16.msra.mxu0 0
        %1330 = vmatpush.bf16.msra.mxu0 %v1321
        %1331 = vmatmul.bf16.gmra.mxu0 %v1317
        %v1332 = vpop.f32.mrf.mxu0
        %v1333 = vadd.f32 0.0, %v1332
        %v1334 = vpop.f32.mrf.mxu0
        %1335 = vdwg.mxu0
        %v1337 = vsel %vm1091, %v1313, 0
        %v1340 = vsel %vm1319, %v1080, 0
        %1342 = vmatpush.bf16.msra.mxu0 0
        %1343 = vmatpush.bf16.msra.mxu0 0
        %1344 = vmatpush.bf16.msra.mxu0 0
        %1345 = vmatpush.bf16.msra.mxu0 0
        %1346 = vmatpush.bf16.msra.mxu0 0
        %1347 = vmatpush.bf16.msra.mxu0 0
        %1348 = vmatpush.bf16.msra.mxu0 0
        %1349 = vmatpush.bf16.msra.mxu0 %v1340
        %1350 = vmatmul.bf16.gmra.mxu0 %v1337
        %v1351 = vpop.f32.mrf.mxu0
        %v1352 = vadd.f32 0.0, %v1351
        %v1353 = vpop.f32.mrf.mxu0
        %1354 = vdwg.mxu0
        %v1356 = vsel %vm1091, %v1314, 0
        %v1359 = vsel %vm1319, %v1081, 0
        %1361 = vmatpush.bf16.msra.mxu0 0
        %1362 = vmatpush.bf16.msra.mxu0 0
        %1363 = vmatpush.bf16.msra.mxu0 0
        %1364 = vmatpush.bf16.msra.mxu0 0
        %1365 = vmatpush.bf16.msra.mxu0 0
        %1366 = vmatpush.bf16.msra.mxu0 0
        %1367 = vmatpush.bf16.msra.mxu0 0
        %1368 = vmatpush.bf16.msra.mxu0 %v1359
        %1369 = vmatmul.bf16.gmra.mxu0 %v1356
        %v1370 = vpop.f32.mrf.mxu0
        %v1371 = vadd.f32 0.0, %v1370
        %v1372 = vpop.f32.mrf.mxu0
        %1373 = vdwg.mxu0
        %v1375 = vsel %vm1091, %v1315, 0
        %v1378 = vsel %vm1319, %v1082, 0
        %1380 = vmatpush.bf16.msra.mxu0 0
        %1381 = vmatpush.bf16.msra.mxu0 0
        %1382 = vmatpush.bf16.msra.mxu0 0
        %1383 = vmatpush.bf16.msra.mxu0 0
        %1384 = vmatpush.bf16.msra.mxu0 0
        %1385 = vmatpush.bf16.msra.mxu0 0
        %1386 = vmatpush.bf16.msra.mxu0 0
        %1387 = vmatpush.bf16.msra.mxu0 %v1378
        %1388 = vmatmul.bf16.gmra.mxu0 %v1375
        %v1389 = vpop.f32.mrf.mxu0
        %v1390 = vadd.f32 0.0, %v1389
        %v1391 = vpop.f32.mrf.mxu0
        %1392 = vdwg.mxu0
        %v1393 = vadd.f32 %v1308, %v1333
        %v1394 = vadd.f32 %v1309, %v1352
        %v1395 = vadd.f32 %v1310, %v1371
        %v1396 = vadd.f32 %v1311, %v1390
        %1397 = vst.msk [vmem:[#allocation5] sm:$0xff] %vm1091, %v1393
        %1398 = vst.msk [vmem:[#allocation5 + $0x8] sm:$0xff] %vm1091, %v1394
        %1399 = vst.msk [vmem:[#allocation5 + $0x10] sm:$0xff] %vm1091, %v1395
        %1400 = vst.msk [vmem:[#allocation5 + $0x18] sm:$0xff] %vm1091, %v1396
        %1401 = vst.msk [vmem:[#allocation3] sm:$0xff] %vm1279, %v1207
        %1402 = vst.msk [vmem:[#allocation3 + $0x8] sm:$0xff] %vm1279, %v1208
        %1403 = vst.msk [vmem:[#allocation3 + $0x10] sm:$0xff] %vm1279, %v1209
        %1404 = vst.msk [vmem:[#allocation3 + $0x18] sm:$0xff] %vm1279, %v1210
        // Predicated region
        $region77: #{tpu_custom_call.1} parent=71 // pred_check
          %p1405 = pneg %p562
        $region78: #{tpu_custom_call.1} parent=71 // pred_check_branch
          %1407 = sbr.rel (%p1405) target = $region80
        $region79: #{tpu_custom_call.1} parent=71 // pred_region
          %v1408 = vld [vmem:[#allocation5] sm:$0xff]
          %v1409 = vld [vmem:[#allocation5 + $0x8] sm:$0xff]
          %v1410 = vld [vmem:[#allocation5 + $0x10] sm:$0xff]
          %v1411 = vld [vmem:[#allocation5 + $0x18] sm:$0xff]
          %v1412 = vld [vmem:[#allocation4] sm:$0xff]
          %v1413 = vld [vmem:[#allocation4 + $0x8] sm:$0xff]
          %v1414 = vld [vmem:[#allocation4 + $0x10] sm:$0xff]
          %v1415 = vld [vmem:[#allocation4 + $0x18] sm:$0xff]
          %v1416 = vrcp.pop %v1412
          %v1417 = vrcp.pop %v1413
          %v1418 = vrcp.pop %v1414
          %v1419 = vrcp.pop %v1415
          %1421 = vset.pattern.permute.xlu0 0
          %1422 = vperm.xlu0 %1421, %v1416
          %v1423 = vpop.permute.xlu0 %1422
          %1426 = vset.pattern.permute.xlu0 0
          %1427 = vperm.xlu0 %1426, %v1417
          %v1428 = vpop.permute.xlu0 %1427
          %1431 = vset.pattern.permute.xlu0 0
          %1432 = vperm.xlu0 %1431, %v1418
          %v1433 = vpop.permute.xlu0 %1432
          %1436 = vset.pattern.permute.xlu0 0
          %1437 = vperm.xlu0 %1436, %v1419
          %v1438 = vpop.permute.xlu0 %1437
          %v1440 = vmul.f32 %v1408, %v1423
          %v1441 = vmul.f32 %v1409, %v1428
          %v1442 = vmul.f32 %v1410, %v1433
          %v1443 = vmul.f32 %v1411, %v1438
          %v1444 = vpack.c.bf16 %v1440, %v1440
          %v1445 = vpack.c.bf16 %v1441, %v1441
          %v1446 = vpack.c.bf16 %v1442, %v1442
          %v1447 = vpack.c.bf16 %v1443, %v1443
          %v1448 = vld [vmem:[%s11] sm:$0xf]
          %v1449 = vld [vmem:[%s11 + $0x4] sm:$0xf]
          %v1450 = vld [vmem:[%s11 + $0x8] sm:$0xf]
          %v1451 = vld [vmem:[%s11 + $0xc] sm:$0xf]
          %v1453 = vsel %vm1091, %v1444, 0
          %v1456 = vsel %vm1319, %v1448, 0
          %1458 = vmatpush.bf16.msra.mxu0 0
          %1459 = vmatpush.bf16.msra.mxu0 0
          %1460 = vmatpush.bf16.msra.mxu0 0
          %1461 = vmatpush.bf16.msra.mxu0 0
          %1462 = vmatpush.bf16.msra.mxu0 0
          %1463 = vmatpush.bf16.msra.mxu0 0
          %1464 = vmatpush.bf16.msra.mxu0 0
          %1465 = vmatpush.bf16.msra.mxu0 %v1456
          %1466 = vmatmul.bf16.gmra.mxu0 %v1453
          %v1467 = vpop.f32.mrf.mxu0
          %v1468 = vadd.f32 0.0, %v1467
          %v1469 = vpop.f32.mrf.mxu0
          %1470 = vdwg.mxu0
          %v1472 = vsel %vm1091, %v1445, 0
          %v1475 = vsel %vm1319, %v1449, 0
          %1477 = vmatpush.bf16.msra.mxu0 0
          %1478 = vmatpush.bf16.msra.mxu0 0
          %1479 = vmatpush.bf16.msra.mxu0 0
          %1480 = vmatpush.bf16.msra.mxu0 0
          %1481 = vmatpush.bf16.msra.mxu0 0
          %1482 = vmatpush.bf16.msra.mxu0 0
          %1483 = vmatpush.bf16.msra.mxu0 0
          %1484 = vmatpush.bf16.msra.mxu0 %v1475
          %1485 = vmatmul.bf16.gmra.mxu0 %v1472
          %v1486 = vpop.f32.mrf.mxu0
          %v1487 = vadd.f32 0.0, %v1486
          %v1488 = vpop.f32.mrf.mxu0
          %1489 = vdwg.mxu0
          %v1491 = vsel %vm1091, %v1446, 0
          %v1494 = vsel %vm1319, %v1450, 0
          %1496 = vmatpush.bf16.msra.mxu0 0
          %1497 = vmatpush.bf16.msra.mxu0 0
          %1498 = vmatpush.bf16.msra.mxu0 0
          %1499 = vmatpush.bf16.msra.mxu0 0
          %1500 = vmatpush.bf16.msra.mxu0 0
          %1501 = vmatpush.bf16.msra.mxu0 0
          %1502 = vmatpush.bf16.msra.mxu0 0
          %1503 = vmatpush.bf16.msra.mxu0 %v1494
          %1504 = vmatmul.bf16.gmra.mxu0 %v1491
          %v1505 = vpop.f32.mrf.mxu0
          %v1506 = vadd.f32 0.0, %v1505
          %v1507 = vpop.f32.mrf.mxu0
          %1508 = vdwg.mxu0
          %v1510 = vsel %vm1091, %v1447, 0
          %v1513 = vsel %vm1319, %v1451, 0
          %1515 = vmatpush.bf16.msra.mxu0 0
          %1516 = vmatpush.bf16.msra.mxu0 0
          %1517 = vmatpush.bf16.msra.mxu0 0
          %1518 = vmatpush.bf16.msra.mxu0 0
          %1519 = vmatpush.bf16.msra.mxu0 0
          %1520 = vmatpush.bf16.msra.mxu0 0
          %1521 = vmatpush.bf16.msra.mxu0 0
          %1522 = vmatpush.bf16.msra.mxu0 %v1513
          %1523 = vmatmul.bf16.gmra.mxu0 %v1510
          %v1524 = vpop.f32.mrf.mxu0
          %v1525 = vadd.f32 0.0, %v1524
          %v1526 = vpop.f32.mrf.mxu0
          %1527 = vdwg.mxu0
          %v1528 = vsel %vm769, %v1468, 0.0
          %v1529 = vsel %vm769, %v1487, 0.0
          %v1530 = vadd.f32 %v1528, %v1529
          %v1531 = vsel %vm769, %v1506, 0.0
          %v1532 = vadd.f32 %v1530, %v1531
          %v1533 = vsel %vm769, %v1525, 0.0
          %v1534 = vadd.f32 %v1532, %v1533
          %v1535 = vld [vmem:[%s12] sm:$0x1]
          %v1537 = vperm.slane %v1535, 0
          %v1539 = vadd.f32 %v1534, %v1537
          %v1540 = vld [vmem:[%s547] sm:$0xff]
          %v1541 = vadd.f32 %v1539, %v1540
          %1542 = vst.msk [vmem:[%s533] sm:$0xff] %vm769, %v1541
        $region80: #{tpu_custom_call.1} parent=71 // pred_fallthru
          _
        %s1543 = sand.u32 %s355, 1
        %s1544 = scalar_lea.sflag [#allocation7], %s1543
        %s1545 = sand.u32 %s355, 1
        %s1546 = smul.addr %s1545, 8
        %s1547 = scalar_lea.vmem [#allocation6], %s1546
        %s1548 = sand.u32 %s383, 1
        %s1549 = scalar_lea.sflag [#allocation9], %s1548
        %s1550 = sand.u32 %s383, 1
        %s1551 = smul.addr %s1550, 8
        %s1552 = scalar_lea.vmem [#allocation8], %s1551
        // Predicated region
        $region81: #{tpu_custom_call.1} parent=71 // pred_check
          %p1553 = pneg %p365
        $region82: #{tpu_custom_call.1} parent=71 // pred_check_branch
          %1555 = sbr.rel (%p1553) target = $region84
        $region83: #{tpu_custom_call.1} parent=71 // pred_region
          %1557 = vsyncadd %s1544, 0
          %s1558 = sadd.s32 %s38, %s37
          %s1559 = smul.addr %s1558, 8
          %s1560 = scalar_lea.hbm %s13, %s1559
          %s1562 = sshll.u32 %s1547, 4
          %s1563 = int_to_ptr.vmem [resolvable:$true] %s1562
          %s1564 = sshll.u32 %s1560, 4
          %s1565 = int_to_ptr.hbm [resolvable:$true] %s1564
          %1567 = dma.vmem_to_hbm [thread:$0]  %s1563, 128, %s1565, %s1544
        $region84: #{tpu_custom_call.1} parent=71 // pred_fallthru
          _
        // Predicated region
        $region85: #{tpu_custom_call.1} parent=71 // pred_check
          %p1568 = pneg %p393
        $region86: #{tpu_custom_call.1} parent=71 // pred_check_branch
          %1570 = sbr.rel (%p1568) target = $region88
        $region87: #{tpu_custom_call.1} parent=71 // pred_region
          %1572 = vsyncadd %s1549, 0
          %s1573 = sadd.s32 %s38, %s37
          %s1574 = smul.addr %s1573, 8
          %s1575 = scalar_lea.hbm %s14, %s1574
          %s1577 = sshll.u32 %s1552, 4
          %s1578 = int_to_ptr.vmem [resolvable:$true] %s1577
          %s1579 = sshll.u32 %s1575, 4
          %s1580 = int_to_ptr.hbm [resolvable:$true] %s1579
          %1582 = dma.vmem_to_hbm [thread:$0]  %s1578, 128, %s1580, %s1549
        $region88: #{tpu_custom_call.1} parent=71 // pred_fallthru
          _
      $region72: #{tpu_custom_call.1} parent=5 // pred_fallthru
        _
      %p1583 = scmp.le.s32.totalorder 2, %s27
      // Predicated region
      $region89: #{tpu_custom_call.1} parent=5 // pred_check
        %p1584 = pneg %p1583
      $region90: #{tpu_custom_call.1} parent=5 // pred_check_branch
        %1586 = sbr.rel (%p1584) target = $region92
      $region91: #{tpu_custom_call.1} parent=5 // pred_region
        %s1587 = ssub.s32 %s27, 2
        // Predicated region
        $region93: #{tpu_custom_call.1} parent=91 // pred_check
          %p1588 = pneg %p371
        $region94: #{tpu_custom_call.1} parent=91 // pred_check_branch
          %1590 = sbr.rel (%p1588) target = $region96
        $region95: #{tpu_custom_call.1} parent=91 // pred_region
          %s1591 = sand.u32 %s356, 1
          %s1592 = scalar_lea.sflag [#allocation7], %s1591
          %s1593 = sand.u32 %s356, 1
          %s1594 = smul.addr %s1593, 8
          %s1595 = scalar_lea.vmem [#allocation6], %s1594
          %1597 = dma.done %s1592, 128
        $region96: #{tpu_custom_call.1} parent=91 // pred_fallthru
          _
        // Predicated region
        $region97: #{tpu_custom_call.1} parent=91 // pred_check
          %p1598 = pneg %p399
        $region98: #{tpu_custom_call.1} parent=91 // pred_check_branch
          %1600 = sbr.rel (%p1598) target = $region100
        $region99: #{tpu_custom_call.1} parent=91 // pred_region
          %s1601 = sand.u32 %s384, 1
          %s1602 = scalar_lea.sflag [#allocation9], %s1601
          %s1603 = sand.u32 %s384, 1
          %s1604 = smul.addr %s1603, 8
          %s1605 = scalar_lea.vmem [#allocation8], %s1604
          %1607 = dma.done %s1602, 128
        $region100: #{tpu_custom_call.1} parent=91 // pred_fallthru
          _
      $region92: #{tpu_custom_call.1} parent=5 // pred_fallthru
        _
    $region6: #{tpu_custom_call.1} parent=1 // loop_footer
      %s31 = sadd.s32 1, %s27
    $region7: #{tpu_custom_call.1} parent=1 // loop_footer_branch
      %26 = sbr.rel target = $region3
    $region8: #{tpu_custom_call.1} parent=1 // loop_exit
      _
    %1608 = vsyncpa [#allocation7], 1
    %s1609 = scalar_lea.sflag [#allocation7], 1
    %1610 = vsyncpa %s1609, 1
    %1611 = vsyncpa [#allocation9], 1
    %s1612 = scalar_lea.sflag [#allocation9], 1
    %1613 = vsyncpa %s1612, 1

</llo_original>
